<compile_context>
chip_gen: v6e
topology: v6e:2x2x1
jax: 0.10.0
libtpu: 0.0.40
codegen_flags: <defaults>
</compile_context>

<pallas_src>
import functools

import jax
import jax.numpy as jnp
from jax.experimental import pallas as pl
from jax.experimental.pallas import tpu as pltpu

LANE = 128


def _round_up(n, m):
    return (n + m - 1) // m * m


def _pick_tile(n, cap, mult=LANE):
    """Largest multiple of `mult` that divides n and is <= cap (n is a multiple of mult)."""
    best = mult
    t = mult
    while t <= n:
        if n % t == 0 and t <= cap:
            best = t
        t += mult
    return best


def _vmem_limit_bytes():
    """~96 MiB on v5e/v6e (128 MiB physical), 32 MiB on v7x (64 MiB physical)."""
    try:
        phys = pltpu.get_tpu_info().vmem_capacity_bytes
    except Exception:
        phys = 64 * 1024 * 1024            # conservative (v7x-sized) fallback
    return int(max(32 * 1024 * 1024, min(96 * 1024 * 1024, phys // 2)))


# --------------------------------------------------------------------------------------
# small-N path: everything fused in one kernel (launch + h/r round-trip eliminated)
# --------------------------------------------------------------------------------------
def _fused_kernel(x_ref, pe_ref, ah_ref, we_ref, be_ref, wx_ref, wp_ref, bt_ref,
                  o_ref, *, out_p):
    # edge_projection Linear + LeakyReLU (negative_slope = 0.01, PyTorch default).
    proj = jnp.dot(pe_ref[...], we_ref[...], preferred_element_type=jnp.float32) + be_ref[...]
    proj = jnp.where(proj >= 0, proj, 0.01 * proj)
    # fused [GCNConv-transform | residual] matmul (weights concatenated along N).
    hr = (jnp.dot(x_ref[...], wx_ref[...], preferred_element_type=jnp.float32)
          + jnp.dot(proj.astype(jnp.bfloat16), wp_ref[...], preferred_element_type=jnp.float32))
    h = hr[:, :out_p].astype(jnp.bfloat16)
    r = hr[:, out_p:] + bt_ref[...]                      # residual + folded (b_conv + b_res)
    agg = jnp.dot(ah_ref[...], h, preferred_element_type=jnp.float32)
    o_ref[...] = jnp.maximum(agg + r, 0.0).astype(o_ref.dtype)   # ReLU; dropout = identity (eval)


# --------------------------------------------------------------------------------------
# large-N path, stage 1:  h = xb @ W_conv (bf16),  r = xb @ W_res + b (bf16)
# --------------------------------------------------------------------------------------
def _features_kernel(x_ref, pe_ref, we_ref, be_ref, wx_ref, wp_ref, bt_ref,
                     h_ref, r_ref, *, out_p):
    proj = jnp.dot(pe_ref[...], we_ref[...], preferred_element_type=jnp.float32) + be_ref[...]
    proj = jnp.where(proj >= 0, proj, 0.01 * proj)
    hr = (jnp.dot(x_ref[...], wx_ref[...], preferred_element_type=jnp.float32)
          + jnp.dot(proj.astype(jnp.bfloat16), wp_ref[...], preferred_element_type=jnp.float32))
    h_ref[...] = hr[:, :out_p].astype(h_ref.dtype)              # bf16 -> MXU input in stage 2
    r_ref[...] = (hr[:, out_p:] + bt_ref[...]).astype(r_ref.dtype)   # bf16 (halves the store stream)


# --------------------------------------------------------------------------------------
# large-N path, stage 2:  out = relu(A_hat @ h + r); accumulate directly into o_ref
# --------------------------------------------------------------------------------------
def _aggregate_kernel(ah_ref, h_ref, r_ref, o_ref, *, tk, h_resident):
    k = pl.program_id(1)

    @pl.when(k == 0)
    def _():
        o_ref[...] = jnp.zeros_like(o_ref)

    if h_resident:
        # h is a full-array VMEM-resident block; pick the rows matching this A_hat column tile.
        h_blk = h_ref[pl.ds(pl.multiple_of(k * tk, tk), tk), :]
    else:
        h_blk = h_ref[...]
    o_ref[...] += jnp.dot(ah_ref[...], h_blk, preferred_element_type=jnp.float32)

    @pl.when(k == pl.num_programs(1) - 1)
    def _():
        o_ref[...] = jnp.maximum(o_ref[...] + r_ref[...].astype(jnp.float32), 0.0)


def graph_convolution_wrapper(x, edge_index, edge_attr, params, *,
                              row_tile=512, col_tile=2048, force_two_stage=False):
    """x: [N, Fin] f32, edge_index: [2, E] int32 (src, dst), edge_attr: [E, Fe] f32."""
    N, in_f = x.shape
    src, dst = edge_index[0], edge_index[1]
    (W_e, b_e, W_conv_x, W_conv_p, b_conv, W_res_x, W_res_p, b_res) = params
    edge_f, half = W_e.shape
    out_f = W_conv_x.shape[1]
    out_p = _round_up(out_f, LANE)           # lane-dense padded output width
    n_pad = _round_up(N, LANE)               # padded N: every tile is a 128-multiple
    vmem_limit = _vmem_limit_bytes()

    # ---- plain-JAX glue: irregular scatter + symmetric normalization stay outside ----
    pe = jax.ops.segment_sum(edge_attr, src, num_segments=n_pad)      # per-node edge-feature sum
    # A_hat = D^{-1/2} (A + I) D^{-1/2}  (GCNConv add_self_loops=True, symmetric norm);
    # self-loops only on real nodes, padded rows/cols stay zero.
    A = jnp.zeros((n_pad, n_pad), jnp.float32).at[dst, src].add(1.0)
    A = A.at[jnp.arange(N), jnp.arange(N)].add(1.0)
    deg = A.sum(axis=1)
    dinv = jnp.where(deg > 0, jax.lax.rsqrt(jnp.maximum(deg, 1e-30)), 0.0)
    A_hat = (A * dinv[:, None] * dinv[None, :]).astype(jnp.bfloat16)

    # ---- parameter packing: [W_conv | W_res] along N, zero-padded to lane-dense width ----
    def pad_cols(w):
        return jnp.pad(w, ((0, 0), (0, out_p - out_f)))

    Wx_cat = jnp.concatenate([pad_cols(W_conv_x), pad_cols(W_res_x)], axis=1).astype(jnp.bfloat16)
    Wp_cat = jnp.concatenate([pad_cols(W_conv_p), pad_cols(W_res_p)], axis=1).astype(jnp.bfloat16)
    b_tot = pad_cols((b_conv + b_res).reshape(1, out_f)).astype(jnp.float32)
    W_e_b = W_e.astype(jnp.bfloat16)
    b_e_f = b_e.reshape(1, half).astype(jnp.float32)
    x_b = jnp.pad(x, ((0, n_pad - N), (0, 0))).astype(jnp.bfloat16)
    pe_b = pe.astype(jnp.bfloat16)

    flops_feat = 2 * n_pad * (edge_f * half + (in_f + half) * 2 * out_p)
    flops_agg = 2 * n_pad * n_pad * out_p

    # ------------------------------ small-N fused path ------------------------------
    # A_hat (bf16, double-buffered) dominates VMEM here; <=1024 padded nodes is ~2 MiB.
    if n_pad <= 1024 and not force_two_stage:
        full = lambda shape: pl.BlockSpec(shape, lambda i: (0, 0))
        bytes_f = (A_hat.size * 2 + x_b.size * 2 + pe_b.size * 2 + W_e_b.size * 2
                   + Wx_cat.size * 2 + Wp_cat.size * 2 + b_e_f.size * 4 + b_tot.size * 4
                   + n_pad * out_p * 4)
        out_padded = pl.pallas_call(
            functools.partial(_fused_kernel, out_p=out_p),
            out_shape=jax.ShapeDtypeStruct((n_pad, out_p), jnp.float32),
            grid=(1,),
            in_specs=[full(x_b.shape), full(pe_b.shape), full(A_hat.shape),
                      full(W_e_b.shape), full(b_e_f.shape),
                      full(Wx_cat.shape), full(Wp_cat.shape), full(b_tot.shape)],
            out_specs=pl.BlockSpec((n_pad, out_p), lambda i: (0, 0)),
            compiler_params=pltpu.CompilerParams(
                dimension_semantics=("arbitrary",), vmem_limit_bytes=vmem_limit),
            cost_estimate=pl.CostEstimate(flops=flops_feat + flops_agg,
                                          transcendentals=0, bytes_accessed=bytes_f),
        )(x_b, pe_b, A_hat, W_e_b, b_e_f, Wx_cat, Wp_cat, b_tot)
        return out_padded[:N, :out_f]

    # ------------------------------- stage 1 (tiled) --------------------------------
    tm1 = _pick_tile(n_pad, min(1024, n_pad))
    bytes1 = (x_b.size * 2 + pe_b.size * 2 + W_e_b.size * 2 + Wx_cat.size * 2
              + Wp_cat.size * 2 + b_e_f.size * 4 + b_tot.size * 4 + n_pad * out_p * (2 + 2))
    h, r = pl.pallas_call(
        functools.partial(_features_kernel, out_p=out_p),
        out_shape=(jax.ShapeDtypeStruct((n_pad, out_p), jnp.bfloat16),   # h
                   jax.ShapeDtypeStruct((n_pad, out_p), jnp.bfloat16)),  # r (bf16 per review)
        grid=(n_pad // tm1,),
        in_specs=[
            pl.BlockSpec((tm1, in_f), lambda i: (i, 0)),
            pl.BlockSpec((tm1, edge_f), lambda i: (i, 0)),
            pl.BlockSpec(W_e_b.shape, lambda i: (0, 0)),
            pl.BlockSpec(b_e_f.shape, lambda i: (0, 0)),
            pl.BlockSpec(Wx_cat.shape, lambda i: (0, 0)),
            pl.BlockSpec(Wp_cat.shape, lambda i: (0, 0)),
            pl.BlockSpec(b_tot.shape, lambda i: (0, 0)),
        ],
        out_specs=(pl.BlockSpec((tm1, out_p), lambda i: (i, 0)),
                   pl.BlockSpec((tm1, out_p), lambda i: (i, 0))),
        compiler_params=pltpu.CompilerParams(
            dimension_semantics=("parallel",), vmem_limit_bytes=vmem_limit),
        cost_estimate=pl.CostEstimate(flops=flops_feat, transcendentals=0,
                                      bytes_accessed=bytes1),
    )(x_b, pe_b, W_e_b, b_e_f, Wx_cat, Wp_cat, b_tot)

    # ------------------------------- stage 2 (tiled) --------------------------------
    # row tiles "parallel" (keep >=2 so v7x's two TCs both work), A_hat column tiles
    # "arbitrary" reduction accumulated directly into the resident output block.
    tm_cap = min(row_tile, max(LANE, n_pad // 2))
    tm = _pick_tile(n_pad, tm_cap)
    tk = _pick_tile(n_pad, col_tile)
    h_resident = (n_pad * out_p * 2) <= 4 * 1024 * 1024     # keep h fully in VMEM if it fits
    if h_resident:
        h_spec = pl.BlockSpec((n_pad, out_p), lambda i, k: (0, 0))
        h_bytes = h.size * 2
    else:
        h_spec = pl.BlockSpec((tk, out_p), lambda i, k: (k, 0))
        h_bytes = (n_pad // tm) * h.size * 2
    bytes2 = A_hat.size * 2 + h_bytes + r.size * 2 + n_pad * out_p * 4
    out_padded = pl.pallas_call(
        functools.partial(_aggregate_kernel, tk=tk, h_resident=h_resident),
        out_shape=jax.ShapeDtypeStruct((n_pad, out_p), jnp.float32),
        grid=(n_pad // tm, n_pad // tk),
        in_specs=[
            pl.BlockSpec((tm, tk), lambda i, k: (i, k)),       # A_hat block (streamed)
            h_spec,                                            # h (resident or per-k block)
            pl.BlockSpec((tm, out_p), lambda i, k: (i, 0)),    # residual (resident across k)
        ],
        out_specs=pl.BlockSpec((tm, out_p), lambda i, k: (i, 0)),
        compiler_params=pltpu.CompilerParams(
            dimension_semantics=("parallel", "arbitrary"), vmem_limit_bytes=vmem_limit),
        cost_estimate=pl.CostEstimate(flops=flops_agg, transcendentals=0,
                                      bytes_accessed=bytes2),
    )(A_hat, h, r)

    return out_padded[:N, :out_f]


def _reference(x, edge_index, edge_attr, params):
    """Pure-JAX f32 reference of the same forward pass."""
    (W_e, b_e, W_conv_x, W_conv_p, b_conv, W_res_x, W_res_p, b_res) = params
    N = x.shape[0]
    src, dst = edge_index[0], edge_index[1]
    pe = jax.ops.segment_sum(edge_attr, src, num_segments=N)
    proj = pe @ W_e + b_e
    proj = jnp.where(proj >= 0, proj, 0.01 * proj)
    A = jnp.zeros((N, N), x.dtype).at[dst, src].add(1.0) + jnp.eye(N, dtype=x.dtype)
    dinv = jax.lax.rsqrt(A.sum(axis=1))
    A_hat = A * dinv[:, None] * dinv[None, :]
    h = x @ W_conv_x + proj @ W_conv_p
    agg = A_hat @ h + b_conv
    res = x @ W_res_x + proj @ W_res_p + b_res
    return jnp.maximum(agg + res, 0.0)


if __name__ == "__main__":
    # module config: in_features=32, out_features=32, edge_features=16,
    #                propagate_edge_features=False, is_residual=True, norm_layer=None
    N, IN_F, OUT_F, EDGE_F = 256, 32, 32, 16
    HALF = IN_F // 2                       # edge_projection output size
    key = jax.random.PRNGKey(0)
    k = jax.random.split(key, 10)

    # deterministic synthetic inputs
    x = jax.random.normal(k[0], (N, IN_F), jnp.float32)
    # symmetric ring graph: i <-> (i+1) mod N   (E = 2N directed edges)
    i = jnp.arange(N, dtype=jnp.int32)
    edge_index = jnp.concatenate(
        [jnp.stack([i, (i + 1) % N]), jnp.stack([(i + 1) % N, i])], axis=1)   # [2, 2N]
    edge_attr = jax.random.normal(k[1], (edge_index.shape[1], EDGE_F), jnp.float32)

    # deterministic synthetic parameters (shapes from __init__: base = IN_F + IN_F//2)
    params = (
        jax.random.normal(k[2], (EDGE_F, HALF), jnp.float32) * 0.1,   # edge_projection W
        jax.random.normal(k[3], (1, HALF), jnp.float32) * 0.1,        # edge_projection b
        jax.random.normal(k[4], (IN_F, OUT_F), jnp.float32) * 0.1,    # GCNConv W (x part)
        jax.random.normal(k[5], (HALF, OUT_F), jnp.float32) * 0.1,    # GCNConv W (proj part)
        jax.random.normal(k[6], (1, OUT_F), jnp.float32) * 0.1,       # GCNConv bias
        jax.random.normal(k[7], (IN_F, OUT_F), jnp.float32) * 0.1,    # residual W (x part)
        jax.random.normal(k[8], (HALF, OUT_F), jnp.float32) * 0.1,    # residual W (proj part)
        jax.random.normal(k[9], (1, OUT_F), jnp.float32) * 0.1,       # residual bias
    )

    ref = _reference(x, edge_index, edge_attr, params)

    # small-N path: single fused kernel (default at this scale)
    out_fused = graph_convolution_wrapper(x, edge_index, edge_attr, params)
    out_fused = jax.block_until_ready(out_fused)
    assert out_fused.shape == (N, OUT_F)
    err_f = float(jnp.max(jnp.abs(out_fused - ref)))
    assert jnp.allclose(out_fused, ref, atol=3e-2, rtol=3e-2), err_f

    # large-N path exercised at small scale (2x2 parallel x reduction grid,
    # VMEM-resident h, direct accumulation into o_ref); bf16 -> relaxed tolerance.
    out_tiled = graph_convolution_wrapper(x, edge_index, edge_attr, params,
                                          row_tile=128, col_tile=128,
                                          force_two_stage=True)
    out_tiled = jax.block_until_ready(out_tiled)
    err_t = float(jnp.max(jnp.abs(out_tiled - ref)))
    assert jnp.allclose(out_tiled, ref, atol=3e-2, rtol=3e-2), err_t

    print("KERNEL_OK")
</pallas_src>

<mosaic_0001>
module attributes {stable_mosaic.version = 11 : i64} {
  func.func @_fused_kernel(%arg0: i32, %arg1: memref<256x32xbf16, #tpu.memory_space<vmem>>, %arg2: memref<256x16xbf16, #tpu.memory_space<vmem>>, %arg3: memref<256x256xbf16, #tpu.memory_space<vmem>>, %arg4: memref<16x16xbf16, #tpu.memory_space<vmem>>, %arg5: memref<1x16xf32, #tpu.memory_space<vmem>>, %arg6: memref<32x256xbf16, #tpu.memory_space<vmem>>, %arg7: memref<16x256xbf16, #tpu.memory_space<vmem>>, %arg8: memref<1x128xf32, #tpu.memory_space<vmem>>, %arg9: memref<256x128xf32, #tpu.memory_space<vmem>>) attributes {dimension_semantics = [#tpu.dimension_semantics<arbitrary>], iteration_bounds = array<i64: 1>, scalar_prefetch = 0 : i64, scratch_operands = 0 : i64, tpu.core_type = #tpu.core_type<tc>, window_params = [{pipeline_mode = #tpu.pipeline_mode<synchronous>, transform_indices = @transform_0, window_bounds = array<i64: 256, 32>}, {pipeline_mode = #tpu.pipeline_mode<synchronous>, transform_indices = @transform_1, window_bounds = array<i64: 256, 16>}, {pipeline_mode = #tpu.pipeline_mode<synchronous>, transform_indices = @transform_2, window_bounds = array<i64: 256, 256>}, {pipeline_mode = #tpu.pipeline_mode<synchronous>, transform_indices = @transform_3, window_bounds = array<i64: 16, 16>}, {pipeline_mode = #tpu.pipeline_mode<synchronous>, transform_indices = @transform_4, window_bounds = array<i64: 1, 16>}, {pipeline_mode = #tpu.pipeline_mode<synchronous>, transform_indices = @transform_5, window_bounds = array<i64: 32, 256>}, {pipeline_mode = #tpu.pipeline_mode<synchronous>, transform_indices = @transform_6, window_bounds = array<i64: 16, 256>}, {pipeline_mode = #tpu.pipeline_mode<synchronous>, transform_indices = @transform_7, window_bounds = array<i64: 1, 128>}, {pipeline_mode = #tpu.pipeline_mode<synchronous>, transform_indices = @transform_8, window_bounds = array<i64: 256, 128>}]} {
    %c0 = arith.constant 0 : index
    %c0_0 = arith.constant 0 : index
    %0 = vector.load %arg2[%c0, %c0_0] : memref<256x16xbf16, #tpu.memory_space<vmem>>, vector<256x16xbf16>
    %c0_1 = arith.constant 0 : index
    %c0_2 = arith.constant 0 : index
    %1 = vector.load %arg4[%c0_1, %c0_2] : memref<16x16xbf16, #tpu.memory_space<vmem>>, vector<16x16xbf16>
    %cst = arith.constant dense<0.000000e+00> : vector<256x16xf32>
    %2 = tpu.matmul %0, %1, %cst {dimension_numbers = #tpu.dot_dimension_numbers<[1], [0], [0], [1], [0, 0, 1, 1], [], []>} : vector<256x16xbf16>, vector<16x16xbf16>, vector<256x16xf32> -> vector<256x16xf32>
    %c0_3 = arith.constant 0 : index
    %c0_4 = arith.constant 0 : index
    %3 = vector.load %arg5[%c0_3, %c0_4] : memref<1x16xf32, #tpu.memory_space<vmem>>, vector<1x16xf32>
    %4 = vector.broadcast %3 : vector<1x16xf32> to vector<256x16xf32>
    %5 = arith.addf %2, %4 : vector<256x16xf32>
    %cst_5 = arith.constant 0.000000e+00 : f32
    %6 = vector.broadcast %cst_5 : f32 to vector<256x16xf32>
    %7 = arith.cmpf oge, %5, %6 : vector<256x16xf32>
    %cst_6 = arith.constant 0.00999999977 : f32
    %8 = vector.broadcast %cst_6 : f32 to vector<256x16xf32>
    %9 = arith.mulf %8, %5 : vector<256x16xf32>
    %10 = arith.select %7, %5, %9 : vector<256x16xi1>, vector<256x16xf32>
    %c0_7 = arith.constant 0 : index
    %c0_8 = arith.constant 0 : index
    %11 = vector.load %arg1[%c0_7, %c0_8] : memref<256x32xbf16, #tpu.memory_space<vmem>>, vector<256x32xbf16>
    %c0_9 = arith.constant 0 : index
    %c0_10 = arith.constant 0 : index
    %12 = vector.load %arg6[%c0_9, %c0_10] : memref<32x256xbf16, #tpu.memory_space<vmem>>, vector<32x256xbf16>
    %cst_11 = arith.constant dense<0.000000e+00> : vector<256x256xf32>
    %13 = tpu.matmul %11, %12, %cst_11 {dimension_numbers = #tpu.dot_dimension_numbers<[1], [0], [0], [1], [0, 0, 1, 1], [], []>} : vector<256x32xbf16>, vector<32x256xbf16>, vector<256x256xf32> -> vector<256x256xf32>
    %14 = arith.truncf %10 : vector<256x16xf32> to vector<256x16xbf16>
    %c0_12 = arith.constant 0 : index
    %c0_13 = arith.constant 0 : index
    %15 = vector.load %arg7[%c0_12, %c0_13] : memref<16x256xbf16, #tpu.memory_space<vmem>>, vector<16x256xbf16>
    %cst_14 = arith.constant dense<0.000000e+00> : vector<256x256xf32>
    %16 = tpu.matmul %14, %15, %cst_14 {dimension_numbers = #tpu.dot_dimension_numbers<[1], [0], [0], [1], [0, 0, 1, 1], [], []>} : vector<256x16xbf16>, vector<16x256xbf16>, vector<256x256xf32> -> vector<256x256xf32>
    %17 = arith.addf %13, %16 : vector<256x256xf32>
    %18 = vector.extract_strided_slice %17 {offsets = [0, 0], sizes = [256, 128], strides = [1, 1]} : vector<256x256xf32> to vector<256x128xf32>
    %19 = arith.truncf %18 : vector<256x128xf32> to vector<256x128xbf16>
    %20 = vector.extract_strided_slice %17 {offsets = [0, 128], sizes = [256, 128], strides = [1, 1]} : vector<256x256xf32> to vector<256x128xf32>
    %c0_15 = arith.constant 0 : index
    %c0_16 = arith.constant 0 : index
    %21 = vector.load %arg8[%c0_15, %c0_16] : memref<1x128xf32, #tpu.memory_space<vmem>>, vector<1x128xf32>
    %22 = vector.broadcast %21 : vector<1x128xf32> to vector<256x128xf32>
    %23 = arith.addf %20, %22 : vector<256x128xf32>
    %c0_17 = arith.constant 0 : index
    %c0_18 = arith.constant 0 : index
    %24 = vector.load %arg3[%c0_17, %c0_18] : memref<256x256xbf16, #tpu.memory_space<vmem>>, vector<256x256xbf16>
    %cst_19 = arith.constant dense<0.000000e+00> : vector<256x128xf32>
    %25 = tpu.matmul %24, %19, %cst_19 {dimension_numbers = #tpu.dot_dimension_numbers<[1], [0], [0], [1], [0, 0, 1, 1], [], []>} : vector<256x256xbf16>, vector<256x128xbf16>, vector<256x128xf32> -> vector<256x128xf32>
    %26 = arith.addf %25, %23 : vector<256x128xf32>
    %cst_20 = arith.constant 0.000000e+00 : f32
    %27 = vector.broadcast %cst_20 : f32 to vector<256x128xf32>
    %28 = arith.maximumf %26, %27 : vector<256x128xf32>
    %c0_21 = arith.constant 0 : index
    %c0_22 = arith.constant 0 : index
    %29 = vector.load %arg9[%c0_21, %c0_22] : memref<256x128xf32, #tpu.memory_space<vmem>>, vector<256x128xf32>
    tpu.vector_store %arg9[%c0_21, %c0_22], %28 {strides = array<i32>} : memref<256x128xf32, #tpu.memory_space<vmem>>, vector<256x128xf32>,
    return
  }
  func.func @transform_0(%arg0: i32) -> (i32, i32) {
    %c0_i32 = arith.constant 0 : i32
    %c0_i32_0 = arith.constant 0 : i32
    %c0_i32_1 = arith.constant 0 : i32
    return %c0_i32, %c0_i32_0 : i32, i32
  }
  func.func @transform_1(%arg0: i32) -> (i32, i32) {
    %c0_i32 = arith.constant 0 : i32
    %c0_i32_0 = arith.constant 0 : i32
    %c0_i32_1 = arith.constant 0 : i32
    return %c0_i32, %c0_i32_0 : i32, i32
  }
  func.func @transform_2(%arg0: i32) -> (i32, i32) {
    %c0_i32 = arith.constant 0 : i32
    %c0_i32_0 = arith.constant 0 : i32
    %c0_i32_1 = arith.constant 0 : i32
    return %c0_i32, %c0_i32_0 : i32, i32
  }
  func.func @transform_3(%arg0: i32) -> (i32, i32) {
    %c0_i32 = arith.constant 0 : i32
    %c0_i32_0 = arith.constant 0 : i32
    %c0_i32_1 = arith.constant 0 : i32
    return %c0_i32, %c0_i32_0 : i32, i32
  }
  func.func @transform_4(%arg0: i32) -> (i32, i32) {
    %c0_i32 = arith.constant 0 : i32
    %c0_i32_0 = arith.constant 0 : i32
    %c0_i32_1 = arith.constant 0 : i32
    return %c0_i32, %c0_i32_0 : i32, i32
  }
  func.func @transform_5(%arg0: i32) -> (i32, i32) {
    %c0_i32 = arith.constant 0 : i32
    %c0_i32_0 = arith.constant 0 : i32
    %c0_i32_1 = arith.constant 0 : i32
    return %c0_i32, %c0_i32_0 : i32, i32
  }
  func.func @transform_6(%arg0: i32) -> (i32, i32) {
    %c0_i32 = arith.constant 0 : i32
    %c0_i32_0 = arith.constant 0 : i32
    %c0_i32_1 = arith.constant 0 : i32
    return %c0_i32, %c0_i32_0 : i32, i32
  }
  func.func @transform_7(%arg0: i32) -> (i32, i32) {
    %c0_i32 = arith.constant 0 : i32
    %c0_i32_0 = arith.constant 0 : i32
    %c0_i32_1 = arith.constant 0 : i32
    return %c0_i32, %c0_i32_0 : i32, i32
  }
  func.func @transform_8(%arg0: i32) -> (i32, i32) {
    %c0_i32 = arith.constant 0 : i32
    %c0_i32_0 = arith.constant 0 : i32
    %c0_i32_1 = arith.constant 0 : i32
    return %c0_i32, %c0_i32_0 : i32, i32
  }
}

</mosaic_0001>

<llo_original>
// kernel: tpu_custom_call.1
$region0: #{tpu_custom_call.1}
  #allocation0 [shape = 'u32[]', space=smem, size = 0x4, offset = 0x4, fixed_abs, tag = 'smem constant byte address 0x4 - core index']
  #allocation1 [shape = 'u32[144,128]{1,0:T(1,128)}', space=vmem, size = 0x12000, scoped, tag = 'internal scratch']
  %s0 = inlined_call_operand.vmem [shape: bf16[256,32], index: 0, kind: input, shape index: {}]
  %s1 = inlined_call_operand.vmem [shape: bf16[256,16], index: 1, kind: input, shape index: {}]
  %s2 = inlined_call_operand.vmem [shape: bf16[256,256], index: 2, kind: input, shape index: {}]
  %s3 = inlined_call_operand.hbm [shape: bf16[16,16], index: 3, kind: input, shape index: {}]
  %s4 = inlined_call_operand.vmem [shape: f32[1,16], index: 4, kind: input, shape index: {}]
  %s5 = inlined_call_operand.vmem [shape: bf16[32,256], index: 5, kind: input, shape index: {}]
  %s6 = inlined_call_operand.vmem [shape: bf16[16,256], index: 6, kind: input, shape index: {}]
  %s7 = inlined_call_operand.vmem [shape: f32[1,128], index: 7, kind: input, shape index: {}]
  %s8 = inlined_call_operand.hbm [shape: f32[256,128], index: 8, kind: output, shape index: {}]
  %s9 = sld [smem:[#allocation0]]
  $region46: #{tpu_custom_call.1} parent=0
    _
  %s11 = ssub.s32 1, %s9
  %s12 = scalar_select 0, %s11, %s9
  $region1: #{tpu_custom_call.1} parent=0
    #allocation2 [shape = 'u8[4096]{0}', space=vmem, size = 0x1000, scoped, tag = 'input window, operand 3, single buffered']
    #allocation3 [shape = 's32[1]{0}', space=sflag, size = 0x4, scoped, tag = 'scoped memory for tpu_custom_call.1']
    #allocation4 [shape = 's32[1]{0}', space=sflag, size = 0x4, scoped, tag = 'scoped memory for tpu_custom_call.1']
    #allocation5 [shape = 'u8[131072]{0}', space=vmem, size = 0x20000, scoped, tag = 'output window, operand 0, single buffered']
    %13 = vsyncpa [#allocation3], 0
    %14 = vsyncpa [#allocation4], 0
    // Predicated region
    $region2: #{tpu_custom_call.1} parent=1 // pred_check
      _
    $region3: #{tpu_custom_call.1} parent=1 // pred_check_branch
      %16 = sbr.rel (0) target = $region5
    $region4: #{tpu_custom_call.1} parent=1 // pred_region
      _
    $region5: #{tpu_custom_call.1} parent=1 // pred_fallthru
      _
    // Predicated region
    $region6: #{tpu_custom_call.1} parent=1 // pred_check
      _
    $region7: #{tpu_custom_call.1} parent=1 // pred_check_branch
      %18 = sbr.rel (0) target = $region9
    $region8: #{tpu_custom_call.1} parent=1 // pred_region
      _
    $region9: #{tpu_custom_call.1} parent=1 // pred_fallthru
      _
    // Predicated region
    $region10: #{tpu_custom_call.1} parent=1 // pred_check
      _
    $region11: #{tpu_custom_call.1} parent=1 // pred_check_branch
      %20 = sbr.rel (0) target = $region13
    $region12: #{tpu_custom_call.1} parent=1 // pred_region
      _
    $region13: #{tpu_custom_call.1} parent=1 // pred_fallthru
      _
    // Predicated region
    $region14: #{tpu_custom_call.1} parent=1 // pred_check
      _
    $region15: #{tpu_custom_call.1} parent=1 // pred_check_branch
      %22 = sbr.rel (0) target = $region17
    $region16: #{tpu_custom_call.1} parent=1 // pred_region
      %s24 = ssub.s32 128, 128
      %25 = vsyncadd [#allocation3], %s24
      %s26 = sshll.u32 [#allocation2], 4
      %s27 = int_to_ptr.vmem [resolvable:$true] %s26
      %32 = dma.hbm_to_vmem [thread:$0]  %s3, 128, %s27, [#allocation3], 64, 64, 4
    $region17: #{tpu_custom_call.1} parent=1 // pred_fallthru
      _
    // Predicated region
    $region18: #{tpu_custom_call.1} parent=1 // pred_check
      _
    $region19: #{tpu_custom_call.1} parent=1 // pred_check_branch
      %34 = sbr.rel (0) target = $region21
    $region20: #{tpu_custom_call.1} parent=1 // pred_region
      _
    $region21: #{tpu_custom_call.1} parent=1 // pred_fallthru
      _
    // Predicated region
    $region22: #{tpu_custom_call.1} parent=1 // pred_check
      _
    $region23: #{tpu_custom_call.1} parent=1 // pred_check_branch
      %36 = sbr.rel (0) target = $region25
    $region24: #{tpu_custom_call.1} parent=1 // pred_region
      _
    $region25: #{tpu_custom_call.1} parent=1 // pred_fallthru
      _
    // Predicated region
    $region26: #{tpu_custom_call.1} parent=1 // pred_check
      _
    $region27: #{tpu_custom_call.1} parent=1 // pred_check_branch
      %38 = sbr.rel (0) target = $region29
    $region28: #{tpu_custom_call.1} parent=1 // pred_region
      _
    $region29: #{tpu_custom_call.1} parent=1 // pred_fallthru
      _
    // Predicated region
    $region30: #{tpu_custom_call.1} parent=1 // pred_check
      _
    $region31: #{tpu_custom_call.1} parent=1 // pred_check_branch
      %40 = sbr.rel (0) target = $region33
    $region32: #{tpu_custom_call.1} parent=1 // pred_region
      _
    $region33: #{tpu_custom_call.1} parent=1 // pred_fallthru
      _
    // Predicated region
    $region34: #{tpu_custom_call.1} parent=1 // pred_check
      _
    $region35: #{tpu_custom_call.1} parent=1 // pred_check_branch
      %42 = sbr.rel (0) target = $region37
    $region36: #{tpu_custom_call.1} parent=1 // pred_region
      %43 = dma.done [#allocation3], 128
    $region37: #{tpu_custom_call.1} parent=1 // pred_fallthru
      _
    %v45 = vld [vmem:[%s1] sm:$0xf]
    %v46 = vld [vmem:[%s1 + $0x4] sm:$0xf]
    %v47 = vld [vmem:[%s1 + $0x8] sm:$0xf]
    %v48 = vld [vmem:[%s1 + $0xc] sm:$0xf]
    %v49 = vld [vmem:[%s1 + $0x10] sm:$0xf]
    %v50 = vld [vmem:[%s1 + $0x14] sm:$0xf]
    %v51 = vld [vmem:[%s1 + $0x18] sm:$0xf]
    %v52 = vld [vmem:[%s1 + $0x1c] sm:$0xf]
    %v53 = vld [vmem:[%s1 + $0x20] sm:$0xf]
    %v54 = vld [vmem:[%s1 + $0x24] sm:$0xf]
    %v55 = vld [vmem:[%s1 + $0x28] sm:$0xf]
    %v56 = vld [vmem:[%s1 + $0x2c] sm:$0xf]
    %v57 = vld [vmem:[%s1 + $0x30] sm:$0xf]
    %v58 = vld [vmem:[%s1 + $0x34] sm:$0xf]
    %v59 = vld [vmem:[%s1 + $0x38] sm:$0xf]
    %v60 = vld [vmem:[%s1 + $0x3c] sm:$0xf]
    %v61 = vld [vmem:[%s1 + $0x40] sm:$0xf]
    %v62 = vld [vmem:[%s1 + $0x44] sm:$0xf]
    %v63 = vld [vmem:[%s1 + $0x48] sm:$0xf]
    %v64 = vld [vmem:[%s1 + $0x4c] sm:$0xf]
    %v65 = vld [vmem:[%s1 + $0x50] sm:$0xf]
    %v66 = vld [vmem:[%s1 + $0x54] sm:$0xf]
    %v67 = vld [vmem:[%s1 + $0x58] sm:$0xf]
    %v68 = vld [vmem:[%s1 + $0x5c] sm:$0xf]
    %v69 = vld [vmem:[%s1 + $0x60] sm:$0xf]
    %v70 = vld [vmem:[%s1 + $0x64] sm:$0xf]
    %v71 = vld [vmem:[%s1 + $0x68] sm:$0xf]
    %v72 = vld [vmem:[%s1 + $0x6c] sm:$0xf]
    %v73 = vld [vmem:[%s1 + $0x70] sm:$0xf]
    %v74 = vld [vmem:[%s1 + $0x74] sm:$0xf]
    %v75 = vld [vmem:[%s1 + $0x78] sm:$0xf]
    %v76 = vld [vmem:[%s1 + $0x7c] sm:$0xf]
    %v77 = vld [vmem:[#allocation2] sm:$0xf]
    %v78 = vld [vmem:[#allocation2 + $0x4] sm:$0xf]
    %v79 = vld [vmem:[%s4] sm:$0x1]
    %v81 = vlaneseq
    %v82 = vshrl.u32 %v81, 7
    %v83 = vsub.s32 0, %v82
    %v84 = vrot.slane %v79, %v83
    %v118 = vunpack.c.l.b16 %v45
    %v119 = vunpack.c.l.b16 %v46
    %v120 = vunpack.c.l.b16 %v47
    %v121 = vunpack.c.l.b16 %v48
    %v122 = vunpack.c.l.b16 %v49
    %v123 = vunpack.c.l.b16 %v50
    %v124 = vunpack.c.l.b16 %v51
    %v125 = vunpack.c.l.b16 %v52
    %v126 = vunpack.c.l.b16 %v53
    %v127 = vunpack.c.l.b16 %v54
    %v128 = vunpack.c.l.b16 %v55
    %v129 = vunpack.c.l.b16 %v56
    %v130 = vunpack.c.l.b16 %v57
    %v131 = vunpack.c.l.b16 %v58
    %v132 = vunpack.c.l.b16 %v59
    %v133 = vunpack.c.l.b16 %v60
    %v134 = vunpack.c.l.b16 %v61
    %v135 = vunpack.c.l.b16 %v62
    %v136 = vunpack.c.l.b16 %v63
    %v137 = vunpack.c.l.b16 %v64
    %v138 = vunpack.c.l.b16 %v65
    %v139 = vunpack.c.l.b16 %v66
    %v140 = vunpack.c.l.b16 %v67
    %v141 = vunpack.c.l.b16 %v68
    %v142 = vunpack.c.l.b16 %v69
    %v143 = vunpack.c.l.b16 %v70
    %v144 = vunpack.c.l.b16 %v71
    %v145 = vunpack.c.l.b16 %v72
    %v146 = vunpack.c.l.b16 %v73
    %v147 = vunpack.c.l.b16 %v74
    %v148 = vunpack.c.l.b16 %v75
    %v149 = vunpack.c.l.b16 %v76
    %v150 = vpack.c.b16 %v119, %v118
    %v151 = vpack.c.b16 %v121, %v120
    %v152 = vpack.c.b16 %v123, %v122
    %v153 = vpack.c.b16 %v125, %v124
    %v154 = vpack.c.b16 %v127, %v126
    %v155 = vpack.c.b16 %v129, %v128
    %v156 = vpack.c.b16 %v131, %v130
    %v157 = vpack.c.b16 %v133, %v132
    %v158 = vpack.c.b16 %v135, %v134
    %v159 = vpack.c.b16 %v137, %v136
    %v160 = vpack.c.b16 %v139, %v138
    %v161 = vpack.c.b16 %v141, %v140
    %v162 = vpack.c.b16 %v143, %v142
    %v163 = vpack.c.b16 %v145, %v144
    %v164 = vpack.c.b16 %v147, %v146
    %v165 = vpack.c.b16 %v149, %v148
    %v168 = vunpack.c.l.b16 %v77
    %v169 = vunpack.c.l.b16 %v78
    %v170 = vpack.c.b16 %v169, %v168
    %vm172 = vcmask 130048
    %v174 = vsel %vm172, %v150, 0
    %v177 = vsel %vm172, %v151, 0
    %v180 = vsel %vm172, %v152, 0
    %v183 = vsel %vm172, %v153, 0
    %v186 = vsel %vm172, %v154, 0
    %v189 = vsel %vm172, %v155, 0
    %v192 = vsel %vm172, %v156, 0
    %v195 = vsel %vm172, %v157, 0
    %v198 = vsel %vm172, %v158, 0
    %v201 = vsel %vm172, %v159, 0
    %v204 = vsel %vm172, %v160, 0
    %v207 = vsel %vm172, %v161, 0
    %v210 = vsel %vm172, %v162, 0
    %v213 = vsel %vm172, %v163, 0
    %v216 = vsel %vm172, %v164, 0
    %v219 = vsel %vm172, %v165, 0
    %221 = vmatprep.subr.bf16.mxu0 0
    %222 = vmatpush1.bf16.msra.mxu0 0
    %223 = vmatprep.subr.bf16.mxu0 0
    %224 = vmatpush1.bf16.msra.mxu0 0
    %225 = vmatprep.subr.bf16.mxu0 0
    %226 = vmatpush1.bf16.msra.mxu0 0
    %227 = vmatprep.subr.bf16.mxu0 0
    %228 = vmatpush1.bf16.msra.mxu0 0
    %229 = vmatprep.subr.bf16.mxu0 0
    %230 = vmatpush1.bf16.msra.mxu0 0
    %231 = vmatprep.subr.bf16.mxu0 0
    %232 = vmatpush1.bf16.msra.mxu0 0
    %233 = vmatprep.subr.bf16.mxu0 0
    %234 = vmatpush1.bf16.msra.mxu0 0
    %235 = vmatprep.subr.bf16.mxu0 0
    %236 = vmatpush1.bf16.msra.mxu0 %v170
    %237 = vmatprep.subr.bf16.mxu0 0
    %238 = vmatpush2.bf16.msra.mxu0 0
    %239 = vmatprep.subr.bf16.mxu0 0
    %240 = vmatpush2.bf16.msra.mxu0 0
    %241 = vmatprep.subr.bf16.mxu0 0
    %242 = vmatpush2.bf16.msra.mxu0 0
    %243 = vmatprep.subr.bf16.mxu0 0
    %244 = vmatpush2.bf16.msra.mxu0 0
    %245 = vmatprep.subr.bf16.mxu0 0
    %246 = vmatpush2.bf16.msra.mxu0 0
    %247 = vmatprep.subr.bf16.mxu0 0
    %248 = vmatpush2.bf16.msra.mxu0 0
    %249 = vmatprep.subr.bf16.mxu0 0
    %250 = vmatpush2.bf16.msra.mxu0 0
    %251 = vmatprep.subr.bf16.mxu0 0
    %252 = vmatpush2.bf16.msra.mxu0 0
    %253 = vmatprep.mubr.bf16.mxu0 0
    %254 = vmatmul.mubr.bf16.gmra.mxu0 %v174
    %v255 = vpop.f32.mrf.mxu0
    %v256 = vadd.f32 %v84, %v255
    %v257 = vpop.f32.mrf.mxu0
    %v258 = vpop.f32.mrf.mxu0
    %v259 = vadd.f32 %v84, %v258
    %v260 = vpop.f32.mrf.mxu0
    %261 = vmatprep.mubr.bf16.mxu0 0
    %262 = vmatmul.mubr.bf16.gmra.mxu0 %v177
    %v263 = vpop.f32.mrf.mxu0
    %v264 = vadd.f32 %v84, %v263
    %v265 = vpop.f32.mrf.mxu0
    %v266 = vpop.f32.mrf.mxu0
    %v267 = vadd.f32 %v84, %v266
    %v268 = vpop.f32.mrf.mxu0
    %269 = vmatprep.mubr.bf16.mxu0 0
    %270 = vmatmul.mubr.bf16.gmra.mxu0 %v180
    %v271 = vpop.f32.mrf.mxu0
    %v272 = vadd.f32 %v84, %v271
    %v273 = vpop.f32.mrf.mxu0
    %v274 = vpop.f32.mrf.mxu0
    %v275 = vadd.f32 %v84, %v274
    %v276 = vpop.f32.mrf.mxu0
    %277 = vmatprep.mubr.bf16.mxu0 0
    %278 = vmatmul.mubr.bf16.gmra.mxu0 %v183
    %v279 = vpop.f32.mrf.mxu0
    %v280 = vadd.f32 %v84, %v279
    %v281 = vpop.f32.mrf.mxu0
    %v282 = vpop.f32.mrf.mxu0
    %v283 = vadd.f32 %v84, %v282
    %v284 = vpop.f32.mrf.mxu0
    %285 = vmatprep.mubr.bf16.mxu0 0
    %286 = vmatmul.mubr.bf16.gmra.mxu0 %v186
    %v287 = vpop.f32.mrf.mxu0
    %v288 = vadd.f32 %v84, %v287
    %v289 = vpop.f32.mrf.mxu0
    %v290 = vpop.f32.mrf.mxu0
    %v291 = vadd.f32 %v84, %v290
    %v292 = vpop.f32.mrf.mxu0
    %293 = vmatprep.mubr.bf16.mxu0 0
    %294 = vmatmul.mubr.bf16.gmra.mxu0 %v189
    %v295 = vpop.f32.mrf.mxu0
    %v296 = vadd.f32 %v84, %v295
    %v297 = vpop.f32.mrf.mxu0
    %v298 = vpop.f32.mrf.mxu0
    %v299 = vadd.f32 %v84, %v298
    %v300 = vpop.f32.mrf.mxu0
    %301 = vmatprep.mubr.bf16.mxu0 0
    %302 = vmatmul.mubr.bf16.gmra.mxu0 %v192
    %v303 = vpop.f32.mrf.mxu0
    %v304 = vadd.f32 %v84, %v303
    %v305 = vpop.f32.mrf.mxu0
    %v306 = vpop.f32.mrf.mxu0
    %v307 = vadd.f32 %v84, %v306
    %v308 = vpop.f32.mrf.mxu0
    %309 = vmatprep.mubr.bf16.mxu0 0
    %310 = vmatmul.mubr.bf16.gmra.mxu0 %v195
    %v311 = vpop.f32.mrf.mxu0
    %v312 = vadd.f32 %v84, %v311
    %v313 = vpop.f32.mrf.mxu0
    %v314 = vpop.f32.mrf.mxu0
    %v315 = vadd.f32 %v84, %v314
    %v316 = vpop.f32.mrf.mxu0
    %317 = vmatprep.mubr.bf16.mxu0 0
    %318 = vmatmul.mubr.bf16.gmra.mxu0 %v198
    %v319 = vpop.f32.mrf.mxu0
    %v320 = vadd.f32 %v84, %v319
    %v321 = vpop.f32.mrf.mxu0
    %v322 = vpop.f32.mrf.mxu0
    %v323 = vadd.f32 %v84, %v322
    %v324 = vpop.f32.mrf.mxu0
    %325 = vmatprep.mubr.bf16.mxu0 0
    %326 = vmatmul.mubr.bf16.gmra.mxu0 %v201
    %v327 = vpop.f32.mrf.mxu0
    %v328 = vadd.f32 %v84, %v327
    %v329 = vpop.f32.mrf.mxu0
    %v330 = vpop.f32.mrf.mxu0
    %v331 = vadd.f32 %v84, %v330
    %v332 = vpop.f32.mrf.mxu0
    %333 = vmatprep.mubr.bf16.mxu0 0
    %334 = vmatmul.mubr.bf16.gmra.mxu0 %v204
    %v335 = vpop.f32.mrf.mxu0
    %v336 = vadd.f32 %v84, %v335
    %v337 = vpop.f32.mrf.mxu0
    %v338 = vpop.f32.mrf.mxu0
    %v339 = vadd.f32 %v84, %v338
    %v340 = vpop.f32.mrf.mxu0
    %341 = vmatprep.mubr.bf16.mxu0 0
    %342 = vmatmul.mubr.bf16.gmra.mxu0 %v207
    %v343 = vpop.f32.mrf.mxu0
    %v344 = vadd.f32 %v84, %v343
    %v345 = vpop.f32.mrf.mxu0
    %v346 = vpop.f32.mrf.mxu0
    %v347 = vadd.f32 %v84, %v346
    %v348 = vpop.f32.mrf.mxu0
    %349 = vmatprep.mubr.bf16.mxu0 0
    %350 = vmatmul.mubr.bf16.gmra.mxu0 %v210
    %v351 = vpop.f32.mrf.mxu0
    %v352 = vadd.f32 %v84, %v351
    %v353 = vpop.f32.mrf.mxu0
    %v354 = vpop.f32.mrf.mxu0
    %v355 = vadd.f32 %v84, %v354
    %v356 = vpop.f32.mrf.mxu0
    %357 = vmatprep.mubr.bf16.mxu0 0
    %358 = vmatmul.mubr.bf16.gmra.mxu0 %v213
    %v359 = vpop.f32.mrf.mxu0
    %v360 = vadd.f32 %v84, %v359
    %v361 = vpop.f32.mrf.mxu0
    %v362 = vpop.f32.mrf.mxu0
    %v363 = vadd.f32 %v84, %v362
    %v364 = vpop.f32.mrf.mxu0
    %365 = vmatprep.mubr.bf16.mxu0 0
    %366 = vmatmul.mubr.bf16.gmra.mxu0 %v216
    %v367 = vpop.f32.mrf.mxu0
    %v368 = vadd.f32 %v84, %v367
    %v369 = vpop.f32.mrf.mxu0
    %v370 = vpop.f32.mrf.mxu0
    %v371 = vadd.f32 %v84, %v370
    %v372 = vpop.f32.mrf.mxu0
    %373 = vmatprep.mubr.bf16.mxu0 0
    %374 = vmatmul.mubr.bf16.gmra.mxu0 %v219
    %v375 = vpop.f32.mrf.mxu0
    %v376 = vadd.f32 %v84, %v375
    %v377 = vpop.f32.mrf.mxu0
    %v378 = vpop.f32.mrf.mxu0
    %v379 = vadd.f32 %v84, %v378
    %v380 = vpop.f32.mrf.mxu0
    %381 = vdwg.mxu0
    %vm382 = vcmp.ge.f32.partialorder %v256, 0.0
    %vm383 = vcmp.ge.f32.partialorder %v259, 0.0
    %vm384 = vcmp.ge.f32.partialorder %v264, 0.0
    %vm385 = vcmp.ge.f32.partialorder %v267, 0.0
    %vm386 = vcmp.ge.f32.partialorder %v272, 0.0
    %vm387 = vcmp.ge.f32.partialorder %v275, 0.0
    %vm388 = vcmp.ge.f32.partialorder %v280, 0.0
    %vm389 = vcmp.ge.f32.partialorder %v283, 0.0
    %vm390 = vcmp.ge.f32.partialorder %v288, 0.0
    %vm391 = vcmp.ge.f32.partialorder %v291, 0.0
    %vm392 = vcmp.ge.f32.partialorder %v296, 0.0
    %vm393 = vcmp.ge.f32.partialorder %v299, 0.0
    %vm394 = vcmp.ge.f32.partialorder %v304, 0.0
    %vm395 = vcmp.ge.f32.partialorder %v307, 0.0
    %vm396 = vcmp.ge.f32.partialorder %v312, 0.0
    %vm397 = vcmp.ge.f32.partialorder %v315, 0.0
    %vm398 = vcmp.ge.f32.partialorder %v320, 0.0
    %vm399 = vcmp.ge.f32.partialorder %v323, 0.0
    %vm400 = vcmp.ge.f32.partialorder %v328, 0.0
    %vm401 = vcmp.ge.f32.partialorder %v331, 0.0
    %vm402 = vcmp.ge.f32.partialorder %v336, 0.0
    %vm403 = vcmp.ge.f32.partialorder %v339, 0.0
    %vm404 = vcmp.ge.f32.partialorder %v344, 0.0
    %vm405 = vcmp.ge.f32.partialorder %v347, 0.0
    %vm406 = vcmp.ge.f32.partialorder %v352, 0.0
    %vm407 = vcmp.ge.f32.partialorder %v355, 0.0
    %vm408 = vcmp.ge.f32.partialorder %v360, 0.0
    %vm409 = vcmp.ge.f32.partialorder %v363, 0.0
    %vm410 = vcmp.ge.f32.partialorder %v368, 0.0
    %vm411 = vcmp.ge.f32.partialorder %v371, 0.0
    %vm412 = vcmp.ge.f32.partialorder %v376, 0.0
    %vm413 = vcmp.ge.f32.partialorder %v379, 0.0
    %v414 = vmul.f32 %v256, 0.01
    %v415 = vmul.f32 %v259, 0.01
    %v416 = vmul.f32 %v264, 0.01
    %v417 = vmul.f32 %v267, 0.01
    %v418 = vmul.f32 %v272, 0.01
    %v419 = vmul.f32 %v275, 0.01
    %v420 = vmul.f32 %v280, 0.01
    %v421 = vmul.f32 %v283, 0.01
    %v422 = vmul.f32 %v288, 0.01
    %v423 = vmul.f32 %v291, 0.01
    %v424 = vmul.f32 %v296, 0.01
    %v425 = vmul.f32 %v299, 0.01
    %v426 = vmul.f32 %v304, 0.01
    %v427 = vmul.f32 %v307, 0.01
    %v428 = vmul.f32 %v312, 0.01
    %v429 = vmul.f32 %v315, 0.01
    %v430 = vmul.f32 %v320, 0.01
    %v431 = vmul.f32 %v323, 0.01
    %v432 = vmul.f32 %v328, 0.01
    %v433 = vmul.f32 %v331, 0.01
    %v434 = vmul.f32 %v336, 0.01
    %v435 = vmul.f32 %v339, 0.01
    %v436 = vmul.f32 %v344, 0.01
    %v437 = vmul.f32 %v347, 0.01
    %v438 = vmul.f32 %v352, 0.01
    %v439 = vmul.f32 %v355, 0.01
    %v440 = vmul.f32 %v360, 0.01
    %v441 = vmul.f32 %v363, 0.01
    %v442 = vmul.f32 %v368, 0.01
    %v443 = vmul.f32 %v371, 0.01
    %v444 = vmul.f32 %v376, 0.01
    %v445 = vmul.f32 %v379, 0.01
    %v446 = vsel %vm382, %v256, %v414
    %v447 = vsel %vm383, %v259, %v415
    %v448 = vsel %vm384, %v264, %v416
    %v449 = vsel %vm385, %v267, %v417
    %v450 = vsel %vm386, %v272, %v418
    %v451 = vsel %vm387, %v275, %v419
    %v452 = vsel %vm388, %v280, %v420
    %v453 = vsel %vm389, %v283, %v421
    %v454 = vsel %vm390, %v288, %v422
    %v455 = vsel %vm391, %v291, %v423
    %v456 = vsel %vm392, %v296, %v424
    %v457 = vsel %vm393, %v299, %v425
    %v458 = vsel %vm394, %v304, %v426
    %v459 = vsel %vm395, %v307, %v427
    %v460 = vsel %vm396, %v312, %v428
    %v461 = vsel %vm397, %v315, %v429
    %v462 = vsel %vm398, %v320, %v430
    %v463 = vsel %vm399, %v323, %v431
    %v464 = vsel %vm400, %v328, %v432
    %v465 = vsel %vm401, %v331, %v433
    %v466 = vsel %vm402, %v336, %v434
    %v467 = vsel %vm403, %v339, %v435
    %v468 = vsel %vm404, %v344, %v436
    %v469 = vsel %vm405, %v347, %v437
    %v470 = vsel %vm406, %v352, %v438
    %v471 = vsel %vm407, %v355, %v439
    %v472 = vsel %vm408, %v360, %v440
    %v473 = vsel %vm409, %v363, %v441
    %v474 = vsel %vm410, %v368, %v442
    %v475 = vsel %vm411, %v371, %v443
    %v476 = vsel %vm412, %v376, %v444
    %v477 = vsel %vm413, %v379, %v445
    %v478 = vld [vmem:[%s0] sm:$0xf]
    %v479 = vld [vmem:[%s0 + $0x4] sm:$0xf]
    %v480 = vld [vmem:[%s0 + $0x8] sm:$0xf]
    %v481 = vld [vmem:[%s0 + $0xc] sm:$0xf]
    %v482 = vld [vmem:[%s0 + $0x10] sm:$0xf]
    %v483 = vld [vmem:[%s0 + $0x14] sm:$0xf]
    %v484 = vld [vmem:[%s0 + $0x18] sm:$0xf]
    %v485 = vld [vmem:[%s0 + $0x1c] sm:$0xf]
    %v486 = vld [vmem:[%s0 + $0x20] sm:$0xf]
    %v487 = vld [vmem:[%s0 + $0x24] sm:$0xf]
    %v488 = vld [vmem:[%s0 + $0x28] sm:$0xf]
    %v489 = vld [vmem:[%s0 + $0x2c] sm:$0xf]
    %v490 = vld [vmem:[%s0 + $0x30] sm:$0xf]
    %v491 = vld [vmem:[%s0 + $0x34] sm:$0xf]
    %v492 = vld [vmem:[%s0 + $0x38] sm:$0xf]
    %v493 = vld [vmem:[%s0 + $0x3c] sm:$0xf]
    %v494 = vld [vmem:[%s0 + $0x40] sm:$0xf]
    %v495 = vld [vmem:[%s0 + $0x44] sm:$0xf]
    %v496 = vld [vmem:[%s0 + $0x48] sm:$0xf]
    %v497 = vld [vmem:[%s0 + $0x4c] sm:$0xf]
    %v498 = vld [vmem:[%s0 + $0x50] sm:$0xf]
    %v499 = vld [vmem:[%s0 + $0x54] sm:$0xf]
    %v500 = vld [vmem:[%s0 + $0x58] sm:$0xf]
    %v501 = vld [vmem:[%s0 + $0x5c] sm:$0xf]
    %v502 = vld [vmem:[%s0 + $0x60] sm:$0xf]
    %v503 = vld [vmem:[%s0 + $0x64] sm:$0xf]
    %v504 = vld [vmem:[%s0 + $0x68] sm:$0xf]
    %v505 = vld [vmem:[%s0 + $0x6c] sm:$0xf]
    %v506 = vld [vmem:[%s0 + $0x70] sm:$0xf]
    %v507 = vld [vmem:[%s0 + $0x74] sm:$0xf]
    %v508 = vld [vmem:[%s0 + $0x78] sm:$0xf]
    %v509 = vld [vmem:[%s0 + $0x7c] sm:$0xf]
    %v510 = vld [vmem:[%s5] sm:$0xff]
    %v511 = vld [vmem:[%s5 + $0x8] sm:$0xff]
    %v512 = vld [vmem:[%s5 + $0x10] sm:$0xff]
    %v513 = vld [vmem:[%s5 + $0x18] sm:$0xff]
    %v514 = vpack.c.bf16 %v447, %v446
    %v515 = vpack.c.bf16 %v449, %v448
    %v516 = vpack.c.bf16 %v451, %v450
    %v517 = vpack.c.bf16 %v453, %v452
    %v518 = vpack.c.bf16 %v455, %v454
    %v519 = vpack.c.bf16 %v457, %v456
    %v520 = vpack.c.bf16 %v459, %v458
    %v521 = vpack.c.bf16 %v461, %v460
    %v522 = vpack.c.bf16 %v463, %v462
    %v523 = vpack.c.bf16 %v465, %v464
    %v524 = vpack.c.bf16 %v467, %v466
    %v525 = vpack.c.bf16 %v469, %v468
    %v526 = vpack.c.bf16 %v471, %v470
    %v527 = vpack.c.bf16 %v473, %v472
    %v528 = vpack.c.bf16 %v475, %v474
    %v529 = vpack.c.bf16 %v477, %v476
    %v530 = vld [vmem:[%s6] sm:$0xff]
    %v531 = vld [vmem:[%s6 + $0x8] sm:$0xff]
    %v534 = vunpack.c.l.b16 %v530
    %v535 = vunpack.c.h.b16 %v530
    %v536 = vunpack.c.l.b16 %v531
    %v537 = vunpack.c.h.b16 %v531
    %v538 = vpack.c.b16 %v536, %v534
    %v539 = vpack.c.b16 %v537, %v535
    %v543 = vsel %vm172, %v514, 0
    %v546 = vsel %vm172, %v515, 0
    %v549 = vsel %vm172, %v516, 0
    %v552 = vsel %vm172, %v517, 0
    %v555 = vsel %vm172, %v518, 0
    %v558 = vsel %vm172, %v519, 0
    %v561 = vsel %vm172, %v520, 0
    %v564 = vsel %vm172, %v521, 0
    %v567 = vsel %vm172, %v522, 0
    %v570 = vsel %vm172, %v523, 0
    %v573 = vsel %vm172, %v524, 0
    %v576 = vsel %vm172, %v525, 0
    %v579 = vsel %vm172, %v526, 0
    %v582 = vsel %vm172, %v527, 0
    %v585 = vsel %vm172, %v528, 0
    %v588 = vsel %vm172, %v529, 0
    %590 = vmatprep.subr.bf16.mxu0 0
    %591 = vmatpush1.bf16.msra.mxu0 0
    %592 = vmatprep.subr.bf16.mxu0 0
    %593 = vmatpush1.bf16.msra.mxu0 0
    %594 = vmatprep.subr.bf16.mxu0 0
    %595 = vmatpush1.bf16.msra.mxu0 0
    %596 = vmatprep.subr.bf16.mxu0 0
    %597 = vmatpush1.bf16.msra.mxu0 0
    %598 = vmatprep.subr.bf16.mxu0 0
    %599 = vmatpush1.bf16.msra.mxu0 0
    %600 = vmatprep.subr.bf16.mxu0 0
    %601 = vmatpush1.bf16.msra.mxu0 0
    %602 = vmatprep.subr.bf16.mxu0 0
    %603 = vmatpush1.bf16.msra.mxu0 0
    %604 = vmatprep.subr.bf16.mxu0 %v539
    %605 = vmatpush1.bf16.msra.mxu0 %v538
    %606 = vmatprep.subr.bf16.mxu0 0
    %607 = vmatpush2.bf16.msra.mxu0 0
    %608 = vmatprep.subr.bf16.mxu0 0
    %609 = vmatpush2.bf16.msra.mxu0 0
    %610 = vmatprep.subr.bf16.mxu0 0
    %611 = vmatpush2.bf16.msra.mxu0 0
    %612 = vmatprep.subr.bf16.mxu0 0
    %613 = vmatpush2.bf16.msra.mxu0 0
    %614 = vmatprep.subr.bf16.mxu0 0
    %615 = vmatpush2.bf16.msra.mxu0 0
    %616 = vmatprep.subr.bf16.mxu0 0
    %617 = vmatpush2.bf16.msra.mxu0 0
    %618 = vmatprep.subr.bf16.mxu0 0
    %619 = vmatpush2.bf16.msra.mxu0 0
    %620 = vmatprep.subr.bf16.mxu0 0
    %621 = vmatpush2.bf16.msra.mxu0 0
    %622 = vmatprep.mubr.bf16.mxu0 0
    %623 = vmatmul.mubr.bf16.gmra.mxu0 %v543
    %v624 = vpop.f32.mrf.mxu0
    %v625 = vadd.f32 0.0, %v624
    %v626 = vpop.f32.mrf.mxu0
    %v627 = vadd.f32 0.0, %v626
    %v628 = vpop.f32.mrf.mxu0
    %v629 = vadd.f32 0.0, %v628
    %v630 = vpop.f32.mrf.mxu0
    %v631 = vadd.f32 0.0, %v630
    %632 = vmatprep.mubr.bf16.mxu0 0
    %633 = vmatmul.mubr.bf16.gmra.mxu0 %v546
    %v634 = vpop.f32.mrf.mxu0
    %v635 = vadd.f32 0.0, %v634
    %v636 = vpop.f32.mrf.mxu0
    %v637 = vadd.f32 0.0, %v636
    %v638 = vpop.f32.mrf.mxu0
    %v639 = vadd.f32 0.0, %v638
    %v640 = vpop.f32.mrf.mxu0
    %v641 = vadd.f32 0.0, %v640
    %642 = vmatprep.mubr.bf16.mxu0 0
    %643 = vmatmul.mubr.bf16.gmra.mxu0 %v549
    %v644 = vpop.f32.mrf.mxu0
    %v645 = vadd.f32 0.0, %v644
    %v646 = vpop.f32.mrf.mxu0
    %v647 = vadd.f32 0.0, %v646
    %v648 = vpop.f32.mrf.mxu0
    %v649 = vadd.f32 0.0, %v648
    %v650 = vpop.f32.mrf.mxu0
    %v651 = vadd.f32 0.0, %v650
    %652 = vmatprep.mubr.bf16.mxu0 0
    %653 = vmatmul.mubr.bf16.gmra.mxu0 %v552
    %v654 = vpop.f32.mrf.mxu0
    %v655 = vadd.f32 0.0, %v654
    %v656 = vpop.f32.mrf.mxu0
    %v657 = vadd.f32 0.0, %v656
    %v658 = vpop.f32.mrf.mxu0
    %v659 = vadd.f32 0.0, %v658
    %v660 = vpop.f32.mrf.mxu0
    %v661 = vadd.f32 0.0, %v660
    %662 = vmatprep.mubr.bf16.mxu0 0
    %663 = vmatmul.mubr.bf16.gmra.mxu0 %v555
    %v664 = vpop.f32.mrf.mxu0
    %v665 = vadd.f32 0.0, %v664
    %v666 = vpop.f32.mrf.mxu0
    %v667 = vadd.f32 0.0, %v666
    %v668 = vpop.f32.mrf.mxu0
    %v669 = vadd.f32 0.0, %v668
    %v670 = vpop.f32.mrf.mxu0
    %v671 = vadd.f32 0.0, %v670
    %672 = vmatprep.mubr.bf16.mxu0 0
    %673 = vmatmul.mubr.bf16.gmra.mxu0 %v558
    %v674 = vpop.f32.mrf.mxu0
    %v675 = vadd.f32 0.0, %v674
    %v676 = vpop.f32.mrf.mxu0
    %v677 = vadd.f32 0.0, %v676
    %v678 = vpop.f32.mrf.mxu0
    %v679 = vadd.f32 0.0, %v678
    %v680 = vpop.f32.mrf.mxu0
    %v681 = vadd.f32 0.0, %v680
    %682 = vmatprep.mubr.bf16.mxu0 0
    %683 = vmatmul.mubr.bf16.gmra.mxu0 %v561
    %v684 = vpop.f32.mrf.mxu0
    %v685 = vadd.f32 0.0, %v684
    %v686 = vpop.f32.mrf.mxu0
    %v687 = vadd.f32 0.0, %v686
    %v688 = vpop.f32.mrf.mxu0
    %v689 = vadd.f32 0.0, %v688
    %v690 = vpop.f32.mrf.mxu0
    %v691 = vadd.f32 0.0, %v690
    %692 = vmatprep.mubr.bf16.mxu0 0
    %693 = vmatmul.mubr.bf16.gmra.mxu0 %v564
    %v694 = vpop.f32.mrf.mxu0
    %v695 = vadd.f32 0.0, %v694
    %v696 = vpop.f32.mrf.mxu0
    %v697 = vadd.f32 0.0, %v696
    %v698 = vpop.f32.mrf.mxu0
    %v699 = vadd.f32 0.0, %v698
    %v700 = vpop.f32.mrf.mxu0
    %v701 = vadd.f32 0.0, %v700
    %702 = vmatprep.mubr.bf16.mxu0 0
    %703 = vmatmul.mubr.bf16.gmra.mxu0 %v567
    %v704 = vpop.f32.mrf.mxu0
    %v705 = vadd.f32 0.0, %v704
    %v706 = vpop.f32.mrf.mxu0
    %v707 = vadd.f32 0.0, %v706
    %v708 = vpop.f32.mrf.mxu0
    %v709 = vadd.f32 0.0, %v708
    %v710 = vpop.f32.mrf.mxu0
    %v711 = vadd.f32 0.0, %v710
    %712 = vmatprep.mubr.bf16.mxu0 0
    %713 = vmatmul.mubr.bf16.gmra.mxu0 %v570
    %v714 = vpop.f32.mrf.mxu0
    %v715 = vadd.f32 0.0, %v714
    %v716 = vpop.f32.mrf.mxu0
    %v717 = vadd.f32 0.0, %v716
    %v718 = vpop.f32.mrf.mxu0
    %v719 = vadd.f32 0.0, %v718
    %v720 = vpop.f32.mrf.mxu0
    %v721 = vadd.f32 0.0, %v720
    %722 = vmatprep.mubr.bf16.mxu0 0
    %723 = vmatmul.mubr.bf16.gmra.mxu0 %v573
    %v724 = vpop.f32.mrf.mxu0
    %v725 = vadd.f32 0.0, %v724
    %v726 = vpop.f32.mrf.mxu0
    %v727 = vadd.f32 0.0, %v726
    %v728 = vpop.f32.mrf.mxu0
    %v729 = vadd.f32 0.0, %v728
    %v730 = vpop.f32.mrf.mxu0
    %v731 = vadd.f32 0.0, %v730
    %732 = vmatprep.mubr.bf16.mxu0 0
    %733 = vmatmul.mubr.bf16.gmra.mxu0 %v576
    %v734 = vpop.f32.mrf.mxu0
    %v735 = vadd.f32 0.0, %v734
    %v736 = vpop.f32.mrf.mxu0
    %v737 = vadd.f32 0.0, %v736
    %v738 = vpop.f32.mrf.mxu0
    %v739 = vadd.f32 0.0, %v738
    %v740 = vpop.f32.mrf.mxu0
    %v741 = vadd.f32 0.0, %v740
    %742 = vmatprep.mubr.bf16.mxu0 0
    %743 = vmatmul.mubr.bf16.gmra.mxu0 %v579
    %v744 = vpop.f32.mrf.mxu0
    %v745 = vadd.f32 0.0, %v744
    %v746 = vpop.f32.mrf.mxu0
    %v747 = vadd.f32 0.0, %v746
    %v748 = vpop.f32.mrf.mxu0
    %v749 = vadd.f32 0.0, %v748
    %v750 = vpop.f32.mrf.mxu0
    %v751 = vadd.f32 0.0, %v750
    %752 = vmatprep.mubr.bf16.mxu0 0
    %753 = vmatmul.mubr.bf16.gmra.mxu0 %v582
    %v754 = vpop.f32.mrf.mxu0
    %v755 = vadd.f32 0.0, %v754
    %v756 = vpop.f32.mrf.mxu0
    %v757 = vadd.f32 0.0, %v756
    %v758 = vpop.f32.mrf.mxu0
    %v759 = vadd.f32 0.0, %v758
    %v760 = vpop.f32.mrf.mxu0
    %v761 = vadd.f32 0.0, %v760
    %762 = vmatprep.mubr.bf16.mxu0 0
    %763 = vmatmul.mubr.bf16.gmra.mxu0 %v585
    %v764 = vpop.f32.mrf.mxu0
    %v765 = vadd.f32 0.0, %v764
    %v766 = vpop.f32.mrf.mxu0
    %v767 = vadd.f32 0.0, %v766
    %v768 = vpop.f32.mrf.mxu0
    %v769 = vadd.f32 0.0, %v768
    %v770 = vpop.f32.mrf.mxu0
    %v771 = vadd.f32 0.0, %v770
    %772 = vmatprep.mubr.bf16.mxu0 0
    %773 = vmatmul.mubr.bf16.gmra.mxu0 %v588
    %v774 = vpop.f32.mrf.mxu0
    %v775 = vadd.f32 0.0, %v774
    %v776 = vpop.f32.mrf.mxu0
    %v777 = vadd.f32 0.0, %v776
    %v778 = vpop.f32.mrf.mxu0
    %v779 = vadd.f32 0.0, %v778
    %v780 = vpop.f32.mrf.mxu0
    %v781 = vadd.f32 0.0, %v780
    %782 = vdwg.mxu0
    %v815 = vunpack.c.l.b16 %v478
    %v816 = vunpack.c.l.b16 %v479
    %v817 = vunpack.c.l.b16 %v480
    %v818 = vunpack.c.l.b16 %v481
    %v819 = vunpack.c.l.b16 %v482
    %v820 = vunpack.c.l.b16 %v483
    %v821 = vunpack.c.l.b16 %v484
    %v822 = vunpack.c.l.b16 %v485
    %v823 = vunpack.c.l.b16 %v486
    %v824 = vunpack.c.l.b16 %v487
    %v825 = vunpack.c.l.b16 %v488
    %v826 = vunpack.c.l.b16 %v489
    %v827 = vunpack.c.l.b16 %v490
    %v828 = vunpack.c.l.b16 %v491
    %v829 = vunpack.c.l.b16 %v492
    %v830 = vunpack.c.l.b16 %v493
    %v831 = vunpack.c.l.b16 %v494
    %v832 = vunpack.c.l.b16 %v495
    %v833 = vunpack.c.l.b16 %v496
    %v834 = vunpack.c.l.b16 %v497
    %v835 = vunpack.c.l.b16 %v498
    %v836 = vunpack.c.l.b16 %v499
    %v837 = vunpack.c.l.b16 %v500
    %v838 = vunpack.c.l.b16 %v501
    %v839 = vunpack.c.l.b16 %v502
    %v840 = vunpack.c.l.b16 %v503
    %v841 = vunpack.c.l.b16 %v504
    %v842 = vunpack.c.l.b16 %v505
    %v843 = vunpack.c.l.b16 %v506
    %v844 = vunpack.c.l.b16 %v507
    %v845 = vunpack.c.l.b16 %v508
    %v846 = vunpack.c.l.b16 %v509
    %v847 = vpack.c.b16 %v816, %v815
    %v848 = vpack.c.b16 %v818, %v817
    %v849 = vpack.c.b16 %v820, %v819
    %v850 = vpack.c.b16 %v822, %v821
    %v851 = vpack.c.b16 %v824, %v823
    %v852 = vpack.c.b16 %v826, %v825
    %v853 = vpack.c.b16 %v828, %v827
    %v854 = vpack.c.b16 %v830, %v829
    %v855 = vpack.c.b16 %v832, %v831
    %v856 = vpack.c.b16 %v834, %v833
    %v857 = vpack.c.b16 %v836, %v835
    %v858 = vpack.c.b16 %v838, %v837
    %v859 = vpack.c.b16 %v840, %v839
    %v860 = vpack.c.b16 %v842, %v841
    %v861 = vpack.c.b16 %v844, %v843
    %v862 = vpack.c.b16 %v846, %v845
    %v867 = vunpack.c.l.b16 %v510
    %v868 = vunpack.c.h.b16 %v510
    %v869 = vunpack.c.l.b16 %v511
    %v870 = vunpack.c.h.b16 %v511
    %v871 = vunpack.c.l.b16 %v512
    %v872 = vunpack.c.h.b16 %v512
    %v873 = vunpack.c.l.b16 %v513
    %v874 = vunpack.c.h.b16 %v513
    %v875 = vpack.c.b16 %v869, %v867
    %v876 = vpack.c.b16 %v870, %v868
    %v877 = vpack.c.b16 %v873, %v871
    %v878 = vpack.c.b16 %v874, %v872
    %vm883 = vcmask 261120
    %v885 = vsel %vm883, %v847, 0
    %v888 = vsel %vm883, %v848, 0
    %v891 = vsel %vm883, %v849, 0
    %v894 = vsel %vm883, %v850, 0
    %v897 = vsel %vm883, %v851, 0
    %v900 = vsel %vm883, %v852, 0
    %v903 = vsel %vm883, %v853, 0
    %v906 = vsel %vm883, %v854, 0
    %v909 = vsel %vm883, %v855, 0
    %v912 = vsel %vm883, %v856, 0
    %v915 = vsel %vm883, %v857, 0
    %v918 = vsel %vm883, %v858, 0
    %v921 = vsel %vm883, %v859, 0
    %v924 = vsel %vm883, %v860, 0
    %v927 = vsel %vm883, %v861, 0
    %v930 = vsel %vm883, %v862, 0
    %932 = vmatprep.subr.bf16.mxu0 0
    %933 = vmatpush1.bf16.msra.mxu0 0
    %934 = vmatprep.subr.bf16.mxu0 0
    %935 = vmatpush1.bf16.msra.mxu0 0
    %936 = vmatprep.subr.bf16.mxu0 0
    %937 = vmatpush1.bf16.msra.mxu0 0
    %938 = vmatprep.subr.bf16.mxu0 0
    %939 = vmatpush1.bf16.msra.mxu0 0
    %940 = vmatprep.subr.bf16.mxu0 0
    %941 = vmatpush1.bf16.msra.mxu0 0
    %942 = vmatprep.subr.bf16.mxu0 0
    %943 = vmatpush1.bf16.msra.mxu0 0
    %944 = vmatprep.subr.bf16.mxu0 %v878
    %945 = vmatpush1.bf16.msra.mxu0 %v877
    %946 = vmatprep.subr.bf16.mxu0 %v876
    %947 = vmatpush1.bf16.msra.mxu0 %v875
    %948 = vmatprep.subr.bf16.mxu0 0
    %949 = vmatpush2.bf16.msra.mxu0 0
    %950 = vmatprep.subr.bf16.mxu0 0
    %951 = vmatpush2.bf16.msra.mxu0 0
    %952 = vmatprep.subr.bf16.mxu0 0
    %953 = vmatpush2.bf16.msra.mxu0 0
    %954 = vmatprep.subr.bf16.mxu0 0
    %955 = vmatpush2.bf16.msra.mxu0 0
    %956 = vmatprep.subr.bf16.mxu0 0
    %957 = vmatpush2.bf16.msra.mxu0 0
    %958 = vmatprep.subr.bf16.mxu0 0
    %959 = vmatpush2.bf16.msra.mxu0 0
    %960 = vmatprep.subr.bf16.mxu0 0
    %961 = vmatpush2.bf16.msra.mxu0 0
    %962 = vmatprep.subr.bf16.mxu0 0
    %963 = vmatpush2.bf16.msra.mxu0 0
    %964 = vmatprep.mubr.bf16.mxu0 0
    %965 = vmatmul.mubr.bf16.gmra.mxu0 %v885
    %v966 = vpop.f32.mrf.mxu0
    %v967 = vadd.f32 %v625, %v966
    %v968 = vpop.f32.mrf.mxu0
    %v969 = vadd.f32 %v627, %v968
    %v970 = vpop.f32.mrf.mxu0
    %v971 = vadd.f32 %v629, %v970
    %v972 = vpop.f32.mrf.mxu0
    %v973 = vadd.f32 %v631, %v972
    %974 = vmatprep.mubr.bf16.mxu0 0
    %975 = vmatmul.mubr.bf16.gmra.mxu0 %v888
    %v976 = vpop.f32.mrf.mxu0
    %v977 = vadd.f32 %v635, %v976
    %v978 = vpop.f32.mrf.mxu0
    %v979 = vadd.f32 %v637, %v978
    %v980 = vpop.f32.mrf.mxu0
    %v981 = vadd.f32 %v639, %v980
    %v982 = vpop.f32.mrf.mxu0
    %v983 = vadd.f32 %v641, %v982
    %984 = vmatprep.mubr.bf16.mxu0 0
    %985 = vmatmul.mubr.bf16.gmra.mxu0 %v891
    %v986 = vpop.f32.mrf.mxu0
    %v987 = vadd.f32 %v645, %v986
    %v988 = vpop.f32.mrf.mxu0
    %v989 = vadd.f32 %v647, %v988
    %v990 = vpop.f32.mrf.mxu0
    %v991 = vadd.f32 %v649, %v990
    %v992 = vpop.f32.mrf.mxu0
    %v993 = vadd.f32 %v651, %v992
    %994 = vmatprep.mubr.bf16.mxu0 0
    %995 = vmatmul.mubr.bf16.gmra.mxu0 %v894
    %v996 = vpop.f32.mrf.mxu0
    %v997 = vadd.f32 %v655, %v996
    %v998 = vpop.f32.mrf.mxu0
    %v999 = vadd.f32 %v657, %v998
    %v1000 = vpop.f32.mrf.mxu0
    %v1001 = vadd.f32 %v659, %v1000
    %v1002 = vpop.f32.mrf.mxu0
    %v1003 = vadd.f32 %v661, %v1002
    %1004 = vmatprep.mubr.bf16.mxu0 0
    %1005 = vmatmul.mubr.bf16.gmra.mxu0 %v897
    %v1006 = vpop.f32.mrf.mxu0
    %v1007 = vadd.f32 %v665, %v1006
    %v1008 = vpop.f32.mrf.mxu0
    %v1009 = vadd.f32 %v667, %v1008
    %v1010 = vpop.f32.mrf.mxu0
    %v1011 = vadd.f32 %v669, %v1010
    %v1012 = vpop.f32.mrf.mxu0
    %v1013 = vadd.f32 %v671, %v1012
    %1014 = vmatprep.mubr.bf16.mxu0 0
    %1015 = vmatmul.mubr.bf16.gmra.mxu0 %v900
    %v1016 = vpop.f32.mrf.mxu0
    %v1017 = vadd.f32 %v675, %v1016
    %v1018 = vpop.f32.mrf.mxu0
    %v1019 = vadd.f32 %v677, %v1018
    %v1020 = vpop.f32.mrf.mxu0
    %v1021 = vadd.f32 %v679, %v1020
    %v1022 = vpop.f32.mrf.mxu0
    %v1023 = vadd.f32 %v681, %v1022
    %1024 = vmatprep.mubr.bf16.mxu0 0
    %1025 = vmatmul.mubr.bf16.gmra.mxu0 %v903
    %v1026 = vpop.f32.mrf.mxu0
    %v1027 = vadd.f32 %v685, %v1026
    %v1028 = vpop.f32.mrf.mxu0
    %v1029 = vadd.f32 %v687, %v1028
    %v1030 = vpop.f32.mrf.mxu0
    %v1031 = vadd.f32 %v689, %v1030
    %v1032 = vpop.f32.mrf.mxu0
    %v1033 = vadd.f32 %v691, %v1032
    %1034 = vmatprep.mubr.bf16.mxu0 0
    %1035 = vmatmul.mubr.bf16.gmra.mxu0 %v906
    %v1036 = vpop.f32.mrf.mxu0
    %v1037 = vadd.f32 %v695, %v1036
    %v1038 = vpop.f32.mrf.mxu0
    %v1039 = vadd.f32 %v697, %v1038
    %v1040 = vpop.f32.mrf.mxu0
    %v1041 = vadd.f32 %v699, %v1040
    %v1042 = vpop.f32.mrf.mxu0
    %v1043 = vadd.f32 %v701, %v1042
    %1044 = vmatprep.mubr.bf16.mxu0 0
    %1045 = vmatmul.mubr.bf16.gmra.mxu0 %v909
    %v1046 = vpop.f32.mrf.mxu0
    %v1047 = vadd.f32 %v705, %v1046
    %v1048 = vpop.f32.mrf.mxu0
    %v1049 = vadd.f32 %v707, %v1048
    %v1050 = vpop.f32.mrf.mxu0
    %v1051 = vadd.f32 %v709, %v1050
    %v1052 = vpop.f32.mrf.mxu0
    %v1053 = vadd.f32 %v711, %v1052
    %1054 = vmatprep.mubr.bf16.mxu0 0
    %1055 = vmatmul.mubr.bf16.gmra.mxu0 %v912
    %v1056 = vpop.f32.mrf.mxu0
    %v1057 = vadd.f32 %v715, %v1056
    %v1058 = vpop.f32.mrf.mxu0
    %v1059 = vadd.f32 %v717, %v1058
    %v1060 = vpop.f32.mrf.mxu0
    %v1061 = vadd.f32 %v719, %v1060
    %v1062 = vpop.f32.mrf.mxu0
    %v1063 = vadd.f32 %v721, %v1062
    %1064 = vmatprep.mubr.bf16.mxu0 0
    %1065 = vmatmul.mubr.bf16.gmra.mxu0 %v915
    %v1066 = vpop.f32.mrf.mxu0
    %v1067 = vadd.f32 %v725, %v1066
    %v1068 = vpop.f32.mrf.mxu0
    %v1069 = vadd.f32 %v727, %v1068
    %v1070 = vpop.f32.mrf.mxu0
    %v1071 = vadd.f32 %v729, %v1070
    %v1072 = vpop.f32.mrf.mxu0
    %v1073 = vadd.f32 %v731, %v1072
    %1074 = vmatprep.mubr.bf16.mxu0 0
    %1075 = vmatmul.mubr.bf16.gmra.mxu0 %v918
    %v1076 = vpop.f32.mrf.mxu0
    %v1077 = vadd.f32 %v735, %v1076
    %v1078 = vpop.f32.mrf.mxu0
    %v1079 = vadd.f32 %v737, %v1078
    %v1080 = vpop.f32.mrf.mxu0
    %v1081 = vadd.f32 %v739, %v1080
    %v1082 = vpop.f32.mrf.mxu0
    %v1083 = vadd.f32 %v741, %v1082
    %1084 = vmatprep.mubr.bf16.mxu0 0
    %1085 = vmatmul.mubr.bf16.gmra.mxu0 %v921
    %v1086 = vpop.f32.mrf.mxu0
    %v1087 = vadd.f32 %v745, %v1086
    %v1088 = vpop.f32.mrf.mxu0
    %v1089 = vadd.f32 %v747, %v1088
    %v1090 = vpop.f32.mrf.mxu0
    %v1091 = vadd.f32 %v749, %v1090
    %v1092 = vpop.f32.mrf.mxu0
    %v1093 = vadd.f32 %v751, %v1092
    %1094 = vmatprep.mubr.bf16.mxu0 0
    %1095 = vmatmul.mubr.bf16.gmra.mxu0 %v924
    %v1096 = vpop.f32.mrf.mxu0
    %v1097 = vadd.f32 %v755, %v1096
    %v1098 = vpop.f32.mrf.mxu0
    %v1099 = vadd.f32 %v757, %v1098
    %v1100 = vpop.f32.mrf.mxu0
    %v1101 = vadd.f32 %v759, %v1100
    %v1102 = vpop.f32.mrf.mxu0
    %v1103 = vadd.f32 %v761, %v1102
    %1104 = vmatprep.mubr.bf16.mxu0 0
    %1105 = vmatmul.mubr.bf16.gmra.mxu0 %v927
    %v1106 = vpop.f32.mrf.mxu0
    %v1107 = vadd.f32 %v765, %v1106
    %v1108 = vpop.f32.mrf.mxu0
    %v1109 = vadd.f32 %v767, %v1108
    %v1110 = vpop.f32.mrf.mxu0
    %v1111 = vadd.f32 %v769, %v1110
    %v1112 = vpop.f32.mrf.mxu0
    %v1113 = vadd.f32 %v771, %v1112
    %1114 = vmatprep.mubr.bf16.mxu0 0
    %1115 = vmatmul.mubr.bf16.gmra.mxu0 %v930
    %v1116 = vpop.f32.mrf.mxu0
    %v1117 = vadd.f32 %v775, %v1116
    %v1118 = vpop.f32.mrf.mxu0
    %v1119 = vadd.f32 %v777, %v1118
    %v1120 = vpop.f32.mrf.mxu0
    %v1121 = vadd.f32 %v779, %v1120
    %v1122 = vpop.f32.mrf.mxu0
    %v1123 = vadd.f32 %v781, %v1122
    %1124 = vdwg.mxu0
    %v1125 = vpack.c.bf16 %v971, %v967
    %v1126 = vpack.c.bf16 %v981, %v977
    %v1127 = vpack.c.bf16 %v991, %v987
    %v1128 = vpack.c.bf16 %v1001, %v997
    %v1129 = vpack.c.bf16 %v1011, %v1007
    %v1130 = vpack.c.bf16 %v1021, %v1017
    %v1131 = vpack.c.bf16 %v1031, %v1027
    %v1132 = vpack.c.bf16 %v1041, %v1037
    %v1133 = vpack.c.bf16 %v1051, %v1047
    %v1134 = vpack.c.bf16 %v1061, %v1057
    %v1135 = vpack.c.bf16 %v1071, %v1067
    %v1136 = vpack.c.bf16 %v1081, %v1077
    %v1137 = vpack.c.bf16 %v1091, %v1087
    %v1138 = vpack.c.bf16 %v1101, %v1097
    %v1139 = vpack.c.bf16 %v1111, %v1107
    %v1140 = vpack.c.bf16 %v1121, %v1117
    %v1141 = vld [vmem:[%s7] sm:$0x1]
    %v1143 = vlaneseq
    %v1144 = vshrl.u32 %v1143, 7
    %v1145 = vsub.s32 0, %v1144
    %v1146 = vrot.slane %v1141, %v1145
    %v1148 = vadd.f32 %v969, %v1146
    %v1149 = vadd.f32 %v973, %v1146
    %v1150 = vadd.f32 %v979, %v1146
    %v1151 = vadd.f32 %v983, %v1146
    %v1152 = vadd.f32 %v989, %v1146
    %v1153 = vadd.f32 %v993, %v1146
    %v1154 = vadd.f32 %v999, %v1146
    %v1155 = vadd.f32 %v1003, %v1146
    %v1156 = vadd.f32 %v1009, %v1146
    %v1157 = vadd.f32 %v1013, %v1146
    %v1158 = vadd.f32 %v1019, %v1146
    %v1159 = vadd.f32 %v1023, %v1146
    %v1160 = vadd.f32 %v1029, %v1146
    %v1161 = vadd.f32 %v1033, %v1146
    %v1162 = vadd.f32 %v1039, %v1146
    %v1163 = vadd.f32 %v1043, %v1146
    %v1164 = vadd.f32 %v1049, %v1146
    %v1165 = vadd.f32 %v1053, %v1146
    %v1166 = vadd.f32 %v1059, %v1146
    %v1167 = vadd.f32 %v1063, %v1146
    %v1168 = vadd.f32 %v1069, %v1146
    %v1169 = vadd.f32 %v1073, %v1146
    %v1170 = vadd.f32 %v1079, %v1146
    %v1171 = vadd.f32 %v1083, %v1146
    %v1172 = vadd.f32 %v1089, %v1146
    %v1173 = vadd.f32 %v1093, %v1146
    %v1174 = vadd.f32 %v1099, %v1146
    %v1175 = vadd.f32 %v1103, %v1146
    %v1176 = vadd.f32 %v1109, %v1146
    %v1177 = vadd.f32 %v1113, %v1146
    %v1178 = vadd.f32 %v1119, %v1146
    %v1179 = vadd.f32 %v1123, %v1146
    %v1180 = vld [vmem:[%s2] sm:$0xff]
    %v1181 = vld [vmem:[%s2 + $0x8] sm:$0xff]
    %v1182 = vld [vmem:[%s2 + $0x10] sm:$0xff]
    %v1183 = vld [vmem:[%s2 + $0x18] sm:$0xff]
    %v1184 = vld [vmem:[%s2 + $0x20] sm:$0xff]
    %v1185 = vld [vmem:[%s2 + $0x28] sm:$0xff]
    %v1186 = vld [vmem:[%s2 + $0x30] sm:$0xff]
    %v1187 = vld [vmem:[%s2 + $0x38] sm:$0xff]
    %v1188 = vld [vmem:[%s2 + $0x40] sm:$0xff]
    %v1189 = vld [vmem:[%s2 + $0x48] sm:$0xff]
    %v1190 = vld [vmem:[%s2 + $0x50] sm:$0xff]
    %v1191 = vld [vmem:[%s2 + $0x58] sm:$0xff]
    %v1192 = vld [vmem:[%s2 + $0x60] sm:$0xff]
    %v1193 = vld [vmem:[%s2 + $0x68] sm:$0xff]
    %v1194 = vld [vmem:[%s2 + $0x70] sm:$0xff]
    %v1195 = vld [vmem:[%s2 + $0x78] sm:$0xff]
    %v1196 = vld [vmem:[%s2 + $0x80] sm:$0xff]
    %v1197 = vld [vmem:[%s2 + $0x88] sm:$0xff]
    %v1198 = vld [vmem:[%s2 + $0x90] sm:$0xff]
    %v1199 = vld [vmem:[%s2 + $0x98] sm:$0xff]
    %v1200 = vld [vmem:[%s2 + $0xa0] sm:$0xff]
    %v1201 = vld [vmem:[%s2 + $0xa8] sm:$0xff]
    %v1202 = vld [vmem:[%s2 + $0xb0] sm:$0xff]
    %v1203 = vld [vmem:[%s2 + $0xb8] sm:$0xff]
    %v1204 = vld [vmem:[%s2 + $0xc0] sm:$0xff]
    %v1205 = vld [vmem:[%s2 + $0xc8] sm:$0xff]
    %v1206 = vld [vmem:[%s2 + $0xd0] sm:$0xff]
    %v1207 = vld [vmem:[%s2 + $0xd8] sm:$0xff]
    %v1208 = vld [vmem:[%s2 + $0xe0] sm:$0xff]
    %v1209 = vld [vmem:[%s2 + $0xe8] sm:$0xff]
    %v1210 = vld [vmem:[%s2 + $0xf0] sm:$0xff]
    %v1211 = vld [vmem:[%s2 + $0xf8] sm:$0xff]
    %v1244 = vunpack.c.l.b16 %v1180
    %v1245 = vunpack.c.h.b16 %v1180
    %v1246 = vunpack.c.l.b16 %v1181
    %v1247 = vunpack.c.h.b16 %v1181
    %v1248 = vunpack.c.l.b16 %v1182
    %v1249 = vunpack.c.h.b16 %v1182
    %v1250 = vunpack.c.l.b16 %v1183
    %v1251 = vunpack.c.h.b16 %v1183
    %v1252 = vunpack.c.l.b16 %v1184
    %v1253 = vunpack.c.h.b16 %v1184
    %v1254 = vunpack.c.l.b16 %v1185
    %v1255 = vunpack.c.h.b16 %v1185
    %v1256 = vunpack.c.l.b16 %v1186
    %v1257 = vunpack.c.h.b16 %v1186
    %v1258 = vunpack.c.l.b16 %v1187
    %v1259 = vunpack.c.h.b16 %v1187
    %v1260 = vunpack.c.l.b16 %v1188
    %v1261 = vunpack.c.h.b16 %v1188
    %v1262 = vunpack.c.l.b16 %v1189
    %v1263 = vunpack.c.h.b16 %v1189
    %v1264 = vunpack.c.l.b16 %v1190
    %v1265 = vunpack.c.h.b16 %v1190
    %v1266 = vunpack.c.l.b16 %v1191
    %v1267 = vunpack.c.h.b16 %v1191
    %v1268 = vunpack.c.l.b16 %v1192
    %v1269 = vunpack.c.h.b16 %v1192
    %v1270 = vunpack.c.l.b16 %v1193
    %v1271 = vunpack.c.h.b16 %v1193
    %v1272 = vunpack.c.l.b16 %v1194
    %v1273 = vunpack.c.h.b16 %v1194
    %v1274 = vunpack.c.l.b16 %v1195
    %v1275 = vunpack.c.h.b16 %v1195
    %v1276 = vunpack.c.l.b16 %v1196
    %v1277 = vunpack.c.h.b16 %v1196
    %v1278 = vunpack.c.l.b16 %v1197
    %v1279 = vunpack.c.h.b16 %v1197
    %v1280 = vunpack.c.l.b16 %v1198
    %v1281 = vunpack.c.h.b16 %v1198
    %v1282 = vunpack.c.l.b16 %v1199
    %v1283 = vunpack.c.h.b16 %v1199
    %v1284 = vunpack.c.l.b16 %v1200
    %v1285 = vunpack.c.h.b16 %v1200
    %v1286 = vunpack.c.l.b16 %v1201
    %v1287 = vunpack.c.h.b16 %v1201
    %v1288 = vunpack.c.l.b16 %v1202
    %v1289 = vunpack.c.h.b16 %v1202
    %v1290 = vunpack.c.l.b16 %v1203
    %v1291 = vunpack.c.h.b16 %v1203
    %v1292 = vunpack.c.l.b16 %v1204
    %v1293 = vunpack.c.h.b16 %v1204
    %v1294 = vunpack.c.l.b16 %v1205
    %v1295 = vunpack.c.h.b16 %v1205
    %v1296 = vunpack.c.l.b16 %v1206
    %v1297 = vunpack.c.h.b16 %v1206
    %v1298 = vunpack.c.l.b16 %v1207
    %v1299 = vunpack.c.h.b16 %v1207
    %v1300 = vunpack.c.l.b16 %v1208
    %v1301 = vunpack.c.h.b16 %v1208
    %v1302 = vunpack.c.l.b16 %v1209
    %v1303 = vunpack.c.h.b16 %v1209
    %v1304 = vunpack.c.l.b16 %v1210
    %v1305 = vunpack.c.h.b16 %v1210
    %v1306 = vunpack.c.l.b16 %v1211
    %v1307 = vunpack.c.h.b16 %v1211
    %v1308 = vpack.c.b16 %v1246, %v1244
    %v1309 = vpack.c.b16 %v1247, %v1245
    %v1310 = vpack.c.b16 %v1250, %v1248
    %v1311 = vpack.c.b16 %v1251, %v1249
    %v1312 = vpack.c.b16 %v1254, %v1252
    %v1313 = vpack.c.b16 %v1255, %v1253
    %v1314 = vpack.c.b16 %v1258, %v1256
    %v1315 = vpack.c.b16 %v1259, %v1257
    %v1316 = vpack.c.b16 %v1262, %v1260
    %v1317 = vpack.c.b16 %v1263, %v1261
    %v1318 = vpack.c.b16 %v1266, %v1264
    %v1319 = vpack.c.b16 %v1267, %v1265
    %v1320 = vpack.c.b16 %v1270, %v1268
    %v1321 = vpack.c.b16 %v1271, %v1269
    %v1322 = vpack.c.b16 %v1274, %v1272
    %v1323 = vpack.c.b16 %v1275, %v1273
    %v1324 = vpack.c.b16 %v1278, %v1276
    %v1325 = vpack.c.b16 %v1279, %v1277
    %v1326 = vpack.c.b16 %v1282, %v1280
    %v1327 = vpack.c.b16 %v1283, %v1281
    %v1328 = vpack.c.b16 %v1286, %v1284
    %v1329 = vpack.c.b16 %v1287, %v1285
    %v1330 = vpack.c.b16 %v1290, %v1288
    %v1331 = vpack.c.b16 %v1291, %v1289
    %v1332 = vpack.c.b16 %v1294, %v1292
    %v1333 = vpack.c.b16 %v1295, %v1293
    %v1334 = vpack.c.b16 %v1298, %v1296
    %v1335 = vpack.c.b16 %v1299, %v1297
    %v1336 = vpack.c.b16 %v1302, %v1300
    %v1337 = vpack.c.b16 %v1303, %v1301
    %v1338 = vpack.c.b16 %v1306, %v1304
    %v1339 = vpack.c.b16 %v1307, %v1305
    %1372 = vmatprep.subr.bf16.mxu0 0
    %1373 = vmatpush1.bf16.msra.mxu0 %v1132
    %1374 = vmatprep.subr.bf16.mxu0 0
    %1375 = vmatpush1.bf16.msra.mxu0 %v1131
    %1376 = vmatprep.subr.bf16.mxu0 0
    %1377 = vmatpush1.bf16.msra.mxu0 %v1130
    %1378 = vmatprep.subr.bf16.mxu0 0
    %1379 = vmatpush1.bf16.msra.mxu0 %v1129
    %1380 = vmatprep.subr.bf16.mxu0 0
    %1381 = vmatpush1.bf16.msra.mxu0 %v1128
    %1382 = vmatprep.subr.bf16.mxu0 0
    %1383 = vmatpush1.bf16.msra.mxu0 %v1127
    %1384 = vmatprep.subr.bf16.mxu0 0
    %1385 = vmatpush1.bf16.msra.mxu0 %v1126
    %1386 = vmatprep.subr.bf16.mxu0 0
    %1387 = vmatpush1.bf16.msra.mxu0 %v1125
    %1388 = vmatprep.subr.bf16.mxu0 0
    %1389 = vmatpush2.bf16.msra.mxu0 %v1140
    %1390 = vmatprep.subr.bf16.mxu0 0
    %1391 = vmatpush2.bf16.msra.mxu0 %v1139
    %1392 = vmatprep.subr.bf16.mxu0 0
    %1393 = vmatpush2.bf16.msra.mxu0 %v1138
    %1394 = vmatprep.subr.bf16.mxu0 0
    %1395 = vmatpush2.bf16.msra.mxu0 %v1137
    %1396 = vmatprep.subr.bf16.mxu0 0
    %1397 = vmatpush2.bf16.msra.mxu0 %v1136
    %1398 = vmatprep.subr.bf16.mxu0 0
    %1399 = vmatpush2.bf16.msra.mxu0 %v1135
    %1400 = vmatprep.subr.bf16.mxu0 0
    %1401 = vmatpush2.bf16.msra.mxu0 %v1134
    %1402 = vmatprep.subr.bf16.mxu0 0
    %1403 = vmatpush2.bf16.msra.mxu0 %v1133
    %1404 = vmatprep.mubr.bf16.mxu0 %v1309
    %1405 = vmatmul.mubr.bf16.gmra.mxu0 %v1308
    %v1406 = vpop.f32.mrf.mxu0
    %v1407 = vadd.f32 %v1148, %v1406
    %v1408 = vpop.f32.mrf.mxu0
    %v1409 = vpop.f32.mrf.mxu0
    %v1410 = vadd.f32 %v1149, %v1409
    %v1411 = vpop.f32.mrf.mxu0
    %1412 = vmatprep.mubr.bf16.mxu0 %v1311
    %1413 = vmatmul.mubr.bf16.gmra.mxu0 %v1310
    %v1414 = vpop.f32.mrf.mxu0
    %v1415 = vadd.f32 %v1150, %v1414
    %v1416 = vpop.f32.mrf.mxu0
    %v1417 = vpop.f32.mrf.mxu0
    %v1418 = vadd.f32 %v1151, %v1417
    %v1419 = vpop.f32.mrf.mxu0
    %1420 = vmatprep.mubr.bf16.mxu0 %v1313
    %1421 = vmatmul.mubr.bf16.gmra.mxu0 %v1312
    %v1422 = vpop.f32.mrf.mxu0
    %v1423 = vadd.f32 %v1152, %v1422
    %v1424 = vpop.f32.mrf.mxu0
    %v1425 = vpop.f32.mrf.mxu0
    %v1426 = vadd.f32 %v1153, %v1425
    %v1427 = vpop.f32.mrf.mxu0
    %1428 = vmatprep.mubr.bf16.mxu0 %v1315
    %1429 = vmatmul.mubr.bf16.gmra.mxu0 %v1314
    %v1430 = vpop.f32.mrf.mxu0
    %v1431 = vadd.f32 %v1154, %v1430
    %v1432 = vpop.f32.mrf.mxu0
    %v1433 = vpop.f32.mrf.mxu0
    %v1434 = vadd.f32 %v1155, %v1433
    %v1435 = vpop.f32.mrf.mxu0
    %1436 = vmatprep.mubr.bf16.mxu0 %v1317
    %1437 = vmatmul.mubr.bf16.gmra.mxu0 %v1316
    %v1438 = vpop.f32.mrf.mxu0
    %v1439 = vadd.f32 %v1156, %v1438
    %v1440 = vpop.f32.mrf.mxu0
    %v1441 = vpop.f32.mrf.mxu0
    %v1442 = vadd.f32 %v1157, %v1441
    %v1443 = vpop.f32.mrf.mxu0
    %1444 = vmatprep.mubr.bf16.mxu0 %v1319
    %1445 = vmatmul.mubr.bf16.gmra.mxu0 %v1318
    %v1446 = vpop.f32.mrf.mxu0
    %v1447 = vadd.f32 %v1158, %v1446
    %v1448 = vpop.f32.mrf.mxu0
    %v1449 = vpop.f32.mrf.mxu0
    %v1450 = vadd.f32 %v1159, %v1449
    %v1451 = vpop.f32.mrf.mxu0
    %1452 = vmatprep.mubr.bf16.mxu0 %v1321
    %1453 = vmatmul.mubr.bf16.gmra.mxu0 %v1320
    %v1454 = vpop.f32.mrf.mxu0
    %v1455 = vadd.f32 %v1160, %v1454
    %v1456 = vpop.f32.mrf.mxu0
    %v1457 = vpop.f32.mrf.mxu0
    %v1458 = vadd.f32 %v1161, %v1457
    %v1459 = vpop.f32.mrf.mxu0
    %1460 = vmatprep.mubr.bf16.mxu0 %v1323
    %1461 = vmatmul.mubr.bf16.gmra.mxu0 %v1322
    %v1462 = vpop.f32.mrf.mxu0
    %v1463 = vadd.f32 %v1162, %v1462
    %v1464 = vpop.f32.mrf.mxu0
    %v1465 = vpop.f32.mrf.mxu0
    %v1466 = vadd.f32 %v1163, %v1465
    %v1467 = vpop.f32.mrf.mxu0
    %1468 = vmatprep.mubr.bf16.mxu0 %v1325
    %1469 = vmatmul.mubr.bf16.gmra.mxu0 %v1324
    %v1470 = vpop.f32.mrf.mxu0
    %v1471 = vadd.f32 %v1164, %v1470
    %v1472 = vpop.f32.mrf.mxu0
    %v1473 = vpop.f32.mrf.mxu0
    %v1474 = vadd.f32 %v1165, %v1473
    %v1475 = vpop.f32.mrf.mxu0
    %1476 = vmatprep.mubr.bf16.mxu0 %v1327
    %1477 = vmatmul.mubr.bf16.gmra.mxu0 %v1326
    %v1478 = vpop.f32.mrf.mxu0
    %v1479 = vadd.f32 %v1166, %v1478
    %v1480 = vpop.f32.mrf.mxu0
    %v1481 = vpop.f32.mrf.mxu0
    %v1482 = vadd.f32 %v1167, %v1481
    %v1483 = vpop.f32.mrf.mxu0
    %1484 = vmatprep.mubr.bf16.mxu0 %v1329
    %1485 = vmatmul.mubr.bf16.gmra.mxu0 %v1328
    %v1486 = vpop.f32.mrf.mxu0
    %v1487 = vadd.f32 %v1168, %v1486
    %v1488 = vpop.f32.mrf.mxu0
    %v1489 = vpop.f32.mrf.mxu0
    %v1490 = vadd.f32 %v1169, %v1489
    %v1491 = vpop.f32.mrf.mxu0
    %1492 = vmatprep.mubr.bf16.mxu0 %v1331
    %1493 = vmatmul.mubr.bf16.gmra.mxu0 %v1330
    %v1494 = vpop.f32.mrf.mxu0
    %v1495 = vadd.f32 %v1170, %v1494
    %v1496 = vpop.f32.mrf.mxu0
    %v1497 = vpop.f32.mrf.mxu0
    %v1498 = vadd.f32 %v1171, %v1497
    %v1499 = vpop.f32.mrf.mxu0
    %1500 = vmatprep.mubr.bf16.mxu0 %v1333
    %1501 = vmatmul.mubr.bf16.gmra.mxu0 %v1332
    %v1502 = vpop.f32.mrf.mxu0
    %v1503 = vadd.f32 %v1172, %v1502
    %v1504 = vpop.f32.mrf.mxu0
    %v1505 = vpop.f32.mrf.mxu0
    %v1506 = vadd.f32 %v1173, %v1505
    %v1507 = vpop.f32.mrf.mxu0
    %1508 = vmatprep.mubr.bf16.mxu0 %v1335
    %1509 = vmatmul.mubr.bf16.gmra.mxu0 %v1334
    %v1510 = vpop.f32.mrf.mxu0
    %v1511 = vadd.f32 %v1174, %v1510
    %v1512 = vpop.f32.mrf.mxu0
    %v1513 = vpop.f32.mrf.mxu0
    %v1514 = vadd.f32 %v1175, %v1513
    %v1515 = vpop.f32.mrf.mxu0
    %1516 = vmatprep.mubr.bf16.mxu0 %v1337
    %1517 = vmatmul.mubr.bf16.gmra.mxu0 %v1336
    %v1518 = vpop.f32.mrf.mxu0
    %v1519 = vadd.f32 %v1176, %v1518
    %v1520 = vpop.f32.mrf.mxu0
    %v1521 = vpop.f32.mrf.mxu0
    %v1522 = vadd.f32 %v1177, %v1521
    %v1523 = vpop.f32.mrf.mxu0
    %1524 = vmatprep.mubr.bf16.mxu0 %v1339
    %1525 = vmatmul.mubr.bf16.gmra.mxu0 %v1338
    %v1526 = vpop.f32.mrf.mxu0
    %v1527 = vadd.f32 %v1178, %v1526
    %v1528 = vpop.f32.mrf.mxu0
    %v1529 = vpop.f32.mrf.mxu0
    %v1530 = vadd.f32 %v1179, %v1529
    %v1531 = vpop.f32.mrf.mxu0
    %1532 = vdwg.mxu0
    %v1533 = vmax.f32 %v1407, 0.0
    %v1534 = vmax.f32 %v1410, 0.0
    %v1535 = vmax.f32 %v1415, 0.0
    %v1536 = vmax.f32 %v1418, 0.0
    %v1537 = vmax.f32 %v1423, 0.0
    %v1538 = vmax.f32 %v1426, 0.0
    %v1539 = vmax.f32 %v1431, 0.0
    %v1540 = vmax.f32 %v1434, 0.0
    %v1541 = vmax.f32 %v1439, 0.0
    %v1542 = vmax.f32 %v1442, 0.0
    %v1543 = vmax.f32 %v1447, 0.0
    %v1544 = vmax.f32 %v1450, 0.0
    %v1545 = vmax.f32 %v1455, 0.0
    %v1546 = vmax.f32 %v1458, 0.0
    %v1547 = vmax.f32 %v1463, 0.0
    %v1548 = vmax.f32 %v1466, 0.0
    %v1549 = vmax.f32 %v1471, 0.0
    %v1550 = vmax.f32 %v1474, 0.0
    %v1551 = vmax.f32 %v1479, 0.0
    %v1552 = vmax.f32 %v1482, 0.0
    %v1553 = vmax.f32 %v1487, 0.0
    %v1554 = vmax.f32 %v1490, 0.0
    %v1555 = vmax.f32 %v1495, 0.0
    %v1556 = vmax.f32 %v1498, 0.0
    %v1557 = vmax.f32 %v1503, 0.0
    %v1558 = vmax.f32 %v1506, 0.0
    %v1559 = vmax.f32 %v1511, 0.0
    %v1560 = vmax.f32 %v1514, 0.0
    %v1561 = vmax.f32 %v1519, 0.0
    %v1562 = vmax.f32 %v1522, 0.0
    %v1563 = vmax.f32 %v1527, 0.0
    %v1564 = vmax.f32 %v1530, 0.0
    %1565 = vst [vmem:[#allocation5] sm:$0xff] %v1533
    %1566 = vst [vmem:[#allocation5 + $0x8] sm:$0xff] %v1534
    %1567 = vst [vmem:[#allocation5 + $0x10] sm:$0xff] %v1535
    %1568 = vst [vmem:[#allocation5 + $0x18] sm:$0xff] %v1536
    %1569 = vst [vmem:[#allocation5 + $0x20] sm:$0xff] %v1537
    %1570 = vst [vmem:[#allocation5 + $0x28] sm:$0xff] %v1538
    %1571 = vst [vmem:[#allocation5 + $0x30] sm:$0xff] %v1539
    %1572 = vst [vmem:[#allocation5 + $0x38] sm:$0xff] %v1540
    %1573 = vst [vmem:[#allocation5 + $0x40] sm:$0xff] %v1541
    %1574 = vst [vmem:[#allocation5 + $0x48] sm:$0xff] %v1542
    %1575 = vst [vmem:[#allocation5 + $0x50] sm:$0xff] %v1543
    %1576 = vst [vmem:[#allocation5 + $0x58] sm:$0xff] %v1544
    %1577 = vst [vmem:[#allocation5 + $0x60] sm:$0xff] %v1545
    %1578 = vst [vmem:[#allocation5 + $0x68] sm:$0xff] %v1546
    %1579 = vst [vmem:[#allocation5 + $0x70] sm:$0xff] %v1547
    %1580 = vst [vmem:[#allocation5 + $0x78] sm:$0xff] %v1548
    %1581 = vst [vmem:[#allocation5 + $0x80] sm:$0xff] %v1549
    %1582 = vst [vmem:[#allocation5 + $0x88] sm:$0xff] %v1550
    %1583 = vst [vmem:[#allocation5 + $0x90] sm:$0xff] %v1551
    %1584 = vst [vmem:[#allocation5 + $0x98] sm:$0xff] %v1552
    %1585 = vst [vmem:[#allocation5 + $0xa0] sm:$0xff] %v1553
    %1586 = vst [vmem:[#allocation5 + $0xa8] sm:$0xff] %v1554
    %1587 = vst [vmem:[#allocation5 + $0xb0] sm:$0xff] %v1555
    %1588 = vst [vmem:[#allocation5 + $0xb8] sm:$0xff] %v1556
    %1589 = vst [vmem:[#allocation5 + $0xc0] sm:$0xff] %v1557
    %1590 = vst [vmem:[#allocation5 + $0xc8] sm:$0xff] %v1558
    %1591 = vst [vmem:[#allocation5 + $0xd0] sm:$0xff] %v1559
    %1592 = vst [vmem:[#allocation5 + $0xd8] sm:$0xff] %v1560
    %1593 = vst [vmem:[#allocation5 + $0xe0] sm:$0xff] %v1561
    %1594 = vst [vmem:[#allocation5 + $0xe8] sm:$0xff] %v1562
    %1595 = vst [vmem:[#allocation5 + $0xf0] sm:$0xff] %v1563
    %1596 = vst [vmem:[#allocation5 + $0xf8] sm:$0xff] %v1564
    // Predicated region
    $region38: #{tpu_custom_call.1} parent=1 // pred_check
      _
    $region39: #{tpu_custom_call.1} parent=1 // pred_check_branch
      %1598 = sbr.rel (0) target = $region41
    $region40: #{tpu_custom_call.1} parent=1 // pred_region
      %s1600 = ssub.s32 4096, 4096
      %1601 = vsyncadd [#allocation4], %s1600
      %s1602 = sshll.u32 [#allocation5], 4
      %s1603 = int_to_ptr.vmem [resolvable:$true] %s1602
      %1608 = dma.vmem_to_hbm [thread:$0]  %s1603, 4096, %s8, [#allocation4], 128, 128, 8
    $region41: #{tpu_custom_call.1} parent=1 // pred_fallthru
      _
    // Predicated region
    $region42: #{tpu_custom_call.1} parent=1 // pred_check
      _
    $region43: #{tpu_custom_call.1} parent=1 // pred_check_branch
      %1610 = sbr.rel (0) target = $region45
    $region44: #{tpu_custom_call.1} parent=1 // pred_region
      %1611 = dma.done [#allocation4], 4096
    $region45: #{tpu_custom_call.1} parent=1 // pred_fallthru
      _
    %1612 = vsyncpa [#allocation3], 1
    %1613 = vsyncpa [#allocation4], 1

</llo_original>
